<compile_context>
chip_gen: v6e
topology: v6e:2x2x1
jax: 0.10.0
libtpu: 0.0.40
codegen_flags: <defaults>
</compile_context>

<pallas_src>
import functools
import numpy as np

import jax
import jax.numpy as jnp
from jax.experimental import pallas as pl
from jax.experimental.pallas import tpu as pltpu

AGGREGATORS = ("mean", "max", "min", "std")
SCALERS = ("identity", "amplification", "attenuation")
READOUT_AGGS = ("sum", "max", "mean")
FROZEN_READOUT_AGGS = ("sum", "max", "mean")


# ----------------------------- VMEM budgeting -----------------------------

@functools.lru_cache(maxsize=1)
def _vmem_limit_bytes():
    """Per-generation scoped-VMEM limit: ~3/4 of physical, clamped to [32, 96] MiB."""
    try:
        cap = int(pltpu.get_tpu_info().vmem_capacity_bytes)
        return int(min(max(cap * 3 // 4, 32 * 1024 * 1024), 96 * 1024 * 1024))
    except Exception:
        return 32 * 1024 * 1024  # conservative fallback (safe on all generations)


# ----------------------------- tiled fused linear -----------------------------

def _linear_kernel(x_ref, w_ref, b_ref, o_ref, *, relu):
    # bf16 MXU operands, f32 accumulation
    y = jnp.dot(x_ref[...].astype(jnp.bfloat16), w_ref[...].astype(jnp.bfloat16),
                preferred_element_type=jnp.float32)
    y = y + b_ref[...]
    if relu:
        y = jnp.maximum(y, 0.0)
    o_ref[...] = y


def _pick_row_block(m, target=512):
    """Largest row tile <= target that is a multiple of 8 and divides m (else whole array)."""
    if m <= target:
        return m
    if m % 8:
        return m
    tm = (target // 8) * 8
    while tm >= 8 and m % tm:
        tm -= 8
    return tm if tm >= 8 else m


def linear(x, w, b, *, relu=False, row_block=512):
    """y = act(x @ w + b). x:[M,K], w:[K,N], b:[1,N]. Row-tiled and pipelined."""
    M, K = x.shape
    N = w.shape[1]
    tm = _pick_row_block(M, row_block)
    return pl.pallas_call(
        functools.partial(_linear_kernel, relu=relu),
        out_shape=jax.ShapeDtypeStruct((M, N), jnp.float32),
        grid=(M // tm,),
        in_specs=[
            pl.BlockSpec((tm, K), lambda i: (i, 0)),
            pl.BlockSpec((K, N), lambda i: (0, 0)),
            pl.BlockSpec((1, N), lambda i: (0, 0)),
        ],
        out_specs=pl.BlockSpec((tm, N), lambda i: (i, 0)),
        compiler_params=pltpu.CompilerParams(
            dimension_semantics=("parallel",),
            vmem_limit_bytes=_vmem_limit_bytes()),
    )(x, w, b)


# --------- fused PNA layer: pretrans edge-term + aggregation + posttrans + residual ---------

def _pna_layer_kernel(h_ref, p_src_ref, p_dst_ref, e_ref, adj_ref,
                      w_e_ref, w_h_ref, w_agg_ref, b_post_ref, o_ref,
                      *, hidden, avg_d_log):
    h_dst = h_ref[0]       # [TI, H] f32  destination features (posttrans h-term + residual)
    p_src = p_src_ref[0]   # [N,  H] f32  h @ W_src               (pretrans source term)
    p_dst = p_dst_ref[0]   # [TI, H] f32  h @ W_dst + b_pre       (pretrans dest term + bias)
    adj = adj_ref[0]       # [TI, N] f32
    ti, n = adj.shape

    # pretrans edge contribution: one 2D MXU dot (bf16 in, f32 accumulate).
    # (ti, N, E) -> (ti*N, E) is a leading-dim collapse (view when N % 8 == 0).
    e_2d = e_ref[0].reshape(ti * n, -1)                                 # bf16
    m_e = jnp.dot(e_2d, w_e_ref[...],
                  preferred_element_type=jnp.float32).reshape(ti, n, hidden)

    # full message block lives only in VMEM: m[i, j] = pretrans(h_j, h_i, e_ij)
    m = m_e + p_src[None, :, :] + p_dst[:, None, :]                     # [TI, N, H] f32

    mask = adj[:, :, None] != 0.0                                       # [TI, N, 1]
    deg = jnp.sum(adj, axis=1, keepdims=True)                           # [TI, 1]
    has_edge = deg > 0.0
    inv_deg = 1.0 / jnp.maximum(deg, 1.0)                               # exact (mean/std path)

    big = jnp.float32(1e30)
    mmax = jnp.max(jnp.where(mask, m, -big), axis=1)                    # [TI, H]
    mmin = jnp.min(jnp.where(mask, m, big), axis=1)
    mmax = jnp.where(has_edge, mmax, 0.0)                               # guard isolated nodes
    mmin = jnp.where(has_edge, mmin, 0.0)

    mm = jnp.where(mask, m, 0.0)                                        # masked messages
    mean = jnp.sum(mm, axis=1) * inv_deg
    mean_sq = jnp.sum(mm * mm, axis=1) * inv_deg                        # adj in {0,1}
    var = jnp.maximum(mean_sq - mean * mean, 0.0)                       # relu(E[x^2]-E[x]^2)
    std = jnp.sqrt(var + 1e-5)                                          # PNA EPS = 1e-5

    # aggregator block, lane-dense (4H lanes); order matches AGGREGATORS
    base = jnp.concatenate([mean, mmax, mmin, std], axis=-1)            # [TI, 4H]

    logd = jnp.log(deg + 1.0)
    amp = logd * jnp.float32(1.0 / avg_d_log)
    att = jnp.float32(avg_d_log) * pl.reciprocal(jnp.maximum(logd, 1e-6), approx=True)

    # scaler-major block [identity | amplification | attenuation], 12H lanes -> ONE dot
    scaled = jnp.concatenate([base, base * amp, base * att], axis=-1)   # [TI, 12H]

    h_new = jnp.dot(h_dst.astype(jnp.bfloat16), w_h_ref[...],
                    preferred_element_type=jnp.float32)
    h_new = h_new + jnp.dot(scaled.astype(jnp.bfloat16), w_agg_ref[...],
                            preferred_element_type=jnp.float32)
    h_new = h_new + b_post_ref[...]

    o_ref[0] = h_new + h_dst                                            # residual, single store


def _pick_dst_tile(n, hidden, edim, batch, budget_bytes):
    """Destination-row tile: multiple of 8 dividing N, sized with (8,128)-padded VMEM accounting."""
    if n % 8:
        return n
    lane = 128

    def pad_l(x):
        return -(-x // lane) * lane

    def pad_s(x):
        return -(-x // 8) * 8

    h_l = pad_l(hidden)
    n_s = pad_s(n)

    def vmem_bytes(ti):
        blk = ti * n_s * h_l * 4                          # one padded [TI,N,H] f32 temp
        e_in = ti * n_s * pad_l(edim) * 2                 # e block, bf16, lane-padded
        node_in = pad_s(ti) * h_l * 4                     # h / p_dst / out blocks
        p_src_in = n_s * h_l * 4
        adj_in = pad_s(ti) * pad_l(n) * 4
        w = (pad_s(edim) + pad_s(hidden) + pad_s(12 * hidden)) * h_l * 2 + h_l * 4
        dma = 2 * (e_in + 3 * node_in + adj_in + w) + 2 * p_src_in   # double-buffered streams
        temps = 4 * blk + ti * n_s * lane * 2             # m/mm/where temps + reshaped e copy
        return dma + temps

    # keep >= 2 row tiles when the batch alone cannot feed two TensorCores
    max_ti = n
    if batch < 2 and n >= 16:
        max_ti = n // 2
    ti = (max_ti // 8) * 8
    while ti > 8 and (n % ti or vmem_bytes(ti) > budget_bytes):
        ti -= 8
    return max(ti, 8)


def pna_layer(h, p_src, p_dst, e, adj, w_e, w_h, w_agg, b_post, *, hidden, avg_d_log=1.0):
    B, N, H = h.shape
    E = e.shape[-1]
    vmem_limit = _vmem_limit_bytes()
    ti = _pick_dst_tile(N, H, E, B, int(vmem_limit * 0.6))
    return pl.pallas_call(
        functools.partial(_pna_layer_kernel, hidden=hidden, avg_d_log=avg_d_log),
        out_shape=jax.ShapeDtypeStruct((B, N, H), jnp.float32),
        grid=(B, N // ti),
        in_specs=[
            pl.BlockSpec((1, ti, H), lambda b, i: (b, i, 0)),        # h (dst rows)
            pl.BlockSpec((1, N, H), lambda b, i: (b, 0, 0)),         # p_src (all sources)
            pl.BlockSpec((1, ti, H), lambda b, i: (b, i, 0)),        # p_dst
            pl.BlockSpec((1, ti, N, E), lambda b, i: (b, i, 0, 0)),  # e (bf16)
            pl.BlockSpec((1, ti, N), lambda b, i: (b, i, 0)),        # adj
            pl.BlockSpec((E, H), lambda b, i: (0, 0)),               # w_e   (bf16)
            pl.BlockSpec((H, H), lambda b, i: (0, 0)),               # w_h   (bf16, posttrans h)
            pl.BlockSpec((len(AGGREGATORS) * len(SCALERS) * H, H),
                         lambda b, i: (0, 0)),                       # w_agg (bf16, posttrans agg)
            pl.BlockSpec((1, H), lambda b, i: (0, 0)),               # b_post (f32)
        ],
        out_specs=pl.BlockSpec((1, ti, H), lambda b, i: (b, i, 0)),
        compiler_params=pltpu.CompilerParams(
            dimension_semantics=("parallel", "parallel"),
            vmem_limit_bytes=vmem_limit),
    )(h, p_src, p_dst, e, adj, w_e, w_h, w_agg, b_post)


# ----------------------------- parameters -----------------------------

def init_linear(key, in_dim, out_dim):
    k1, k2 = jax.random.split(key)
    bound = 1.0 / np.sqrt(in_dim)
    w = jax.random.uniform(k1, (in_dim, out_dim), jnp.float32, -bound, bound)
    b = jax.random.uniform(k2, (1, out_dim), jnp.float32, -bound, bound)
    return {"w": w, "b": b}


def init_pna_gnn(key, node_dim, edge_dim, hidden_dim, depth):
    keys = jax.random.split(key, 2 * depth + 1)
    params = {"embed": init_linear(keys[0], node_dim, hidden_dim), "layers": []}
    in_pre = 2 * hidden_dim + edge_dim
    # posttrans input = concat([h, agg]) with agg scaler-major (identity|amp|att) over
    # the aggregator block (mean|max|min|std) -- the kernel's slicing relies on this order.
    in_post = (len(AGGREGATORS) * len(SCALERS) + 1) * hidden_dim
    for l in range(depth):
        params["layers"].append({
            "pretrans": init_linear(keys[1 + 2 * l], in_pre, hidden_dim),
            "posttrans": init_linear(keys[2 + 2 * l], in_post, hidden_dim),
        })
    return params


def init_model(key, cfg):
    keys = jax.random.split(key, 5)
    return {
        "gnn3d": init_pna_gnn(keys[0], cfg["node_dim"], cfg["edge_dim"],
                              cfg["hidden_dim"], cfg["depth"]),
        "gnn2d": init_pna_gnn(keys[1], cfg["node_dim"], cfg["edge_dim"],
                              cfg["hidden_dim"], cfg["depth"]),
        "output": init_linear(keys[2],
                              cfg["hidden_dim"] * len(FROZEN_READOUT_AGGS),
                              cfg["latent3d_dim"]),
        "out2d_l1": init_linear(keys[3],
                                cfg["hidden_dim"] * len(READOUT_AGGS) + cfg["latent3d_dim"],
                                cfg["readout_hidden_dim"]),
        "out2d_l2": init_linear(keys[4], cfg["readout_hidden_dim"], cfg["target_dim"]),
    }


# ----------------------------- forward -----------------------------

def pna_gnn_forward(params, nodes, e_bf16, adj, *, hidden_dim, avg_d_log=1.0):
    """PNAGNN: node embedding + `depth` fused PNA message-passing layers (residual)."""
    B, N, _ = nodes.shape
    H = hidden_dim
    h = linear(nodes.reshape(B * N, -1), params["embed"]["w"], params["embed"]["b"])
    h = h.reshape(B, N, H)

    for lp in params["layers"]:
        wp, bp = lp["pretrans"]["w"], lp["pretrans"]["b"]       # [2H+E, H], [1, H]
        # split pretrans weight: rows [0:H]=W_src, [H:2H]=W_dst, [2H:]=W_e
        w_nodes = jnp.concatenate([wp[:H], wp[H:2 * H]], axis=1)      # [H, 2H]  (src | dst)
        b_nodes = jnp.concatenate([jnp.zeros_like(bp), bp], axis=1)   # bias folded into dst half
        w_e = wp[2 * H:].astype(jnp.bfloat16)                         # [E, H]

        p = linear(h.reshape(B * N, H), w_nodes, b_nodes)             # one tiled matmul per layer
        p_src = p[:, :H].reshape(B, N, H)
        p_dst = p[:, H:].reshape(B, N, H)

        wq, bq = lp["posttrans"]["w"], lp["posttrans"]["b"]           # [13H, H], [1, H]
        w_h = wq[:H].astype(jnp.bfloat16)
        w_agg = wq[H:].astype(jnp.bfloat16)

        h = pna_layer(h, p_src, p_dst, e_bf16, adj, w_e, w_h, w_agg, bq,
                      hidden=H, avg_d_log=avg_d_log)
    return h


def _readout(h, ops):
    """dgl.readout_nodes over the node axis of dense graphs (plain JAX: tiny tensors)."""
    outs = []
    for op in ops:
        if op == "sum":
            outs.append(jnp.sum(h, axis=1))
        elif op == "mean":
            outs.append(jnp.mean(h, axis=1))
        elif op == "max":
            outs.append(jnp.max(h, axis=1))
        elif op == "min":
            outs.append(jnp.min(h, axis=1))
        else:
            raise ValueError(op)
    return jnp.concatenate(outs, axis=-1)


def _dense(x, p, *, relu=False):
    y = jnp.dot(x, p["w"]) + p["b"]
    return jnp.maximum(y, 0.0) if relu else y


def model_forward(params, nodes, e, adj, *, cfg):
    H = cfg["hidden_dim"]
    e_bf16 = e.astype(jnp.bfloat16)   # storage/DMA dtype only; in-kernel math accumulates in f32

    # ------- frozen 3D branch (torch.no_grad / detach) -------
    h3 = pna_gnn_forward(params["gnn3d"], nodes, e_bf16, adj, hidden_dim=H)
    r3 = _readout(h3, FROZEN_READOUT_AGGS)
    latent3d = jax.lax.stop_gradient(_dense(r3, params["output"]))   # MLP(layers=1) = linear

    # ------- trainable 2D branch -------
    h2 = pna_gnn_forward(params["gnn2d"], nodes, e_bf16, adj, hidden_dim=H)
    r2 = _readout(h2, READOUT_AGGS)
    ro = jnp.concatenate([r2, latent3d], axis=-1)

    # output2D = FC(linear -> BatchNorm1d -> ReLU) -> FC(linear).
    # Eval-mode BN with default running stats (mean=0, var=1, gamma=1, beta=0) is the
    # affine map y = x / sqrt(1 + eps); fold it into the first linear.
    bn_scale = np.float32(1.0 / np.sqrt(1.0 + 1e-5))
    y = jnp.maximum(jnp.dot(ro, params["out2d_l1"]["w"] * bn_scale)
                    + params["out2d_l1"]["b"] * bn_scale, 0.0)
    y = jnp.dot(y, params["out2d_l2"]["w"]) + params["out2d_l2"]["b"]
    return y


# ----------------------------- main -----------------------------

if __name__ == "__main__":
    cfg = dict(node_dim=4, edge_dim=4, hidden_dim=32, target_dim=8,
               latent3d_dim=32, readout_hidden_dim=32, depth=2)
    B, N = 2, 8

    key = jax.random.PRNGKey(0)
    kp, kn, ke, ka = jax.random.split(key, 4)

    params = init_model(kp, cfg)
    nodes = jax.random.normal(kn, (B, N, cfg["node_dim"]), jnp.float32)
    edge_feats = jax.random.normal(ke, (B, N, N, cfg["edge_dim"]), jnp.float32)
    adj = (jax.random.uniform(ka, (B, N, N)) < 0.4).astype(jnp.float32)
    adj = jnp.maximum(adj, jnp.eye(N, dtype=jnp.float32)[None])  # ensure in-degree >= 1

    @jax.jit
    def fwd(params, nodes, edge_feats, adj):
        return model_forward(params, nodes, edge_feats, adj, cfg=cfg)

    out = fwd(params, nodes, edge_feats, adj)
    jax.block_until_ready(out)
    assert out.shape == (B, cfg["target_dim"]), out.shape
    assert bool(jnp.all(jnp.isfinite(out)))
    print("KERNEL_OK")
</pallas_src>

<mosaic_0001>
module attributes {stable_mosaic.version = 11 : i64} {
  func.func @_linear_kernel(%arg0: i32, %arg1: memref<16x4xf32, #tpu.memory_space<vmem>>, %arg2: memref<4x32xf32, #tpu.memory_space<vmem>>, %arg3: memref<1x32xf32, #tpu.memory_space<vmem>>, %arg4: memref<16x32xf32, #tpu.memory_space<vmem>>) attributes {dimension_semantics = [#tpu.dimension_semantics<parallel>], iteration_bounds = array<i64: 1>, scalar_prefetch = 0 : i64, scratch_operands = 0 : i64, tpu.core_type = #tpu.core_type<tc>, window_params = [{transform_indices = @transform_0, window_bounds = array<i64: 16, 4>}, {pipeline_mode = #tpu.pipeline_mode<synchronous>, transform_indices = @transform_1, window_bounds = array<i64: 4, 32>}, {pipeline_mode = #tpu.pipeline_mode<synchronous>, transform_indices = @transform_2, window_bounds = array<i64: 1, 32>}, {transform_indices = @transform_3, window_bounds = array<i64: 16, 32>}]} {
    %c0 = arith.constant 0 : index
    %c0_0 = arith.constant 0 : index
    %0 = vector.load %arg1[%c0, %c0_0] : memref<16x4xf32, #tpu.memory_space<vmem>>, vector<16x4xf32>
    %1 = arith.truncf %0 : vector<16x4xf32> to vector<16x4xbf16>
    %c0_1 = arith.constant 0 : index
    %c0_2 = arith.constant 0 : index
    %2 = vector.load %arg2[%c0_1, %c0_2] : memref<4x32xf32, #tpu.memory_space<vmem>>, vector<4x32xf32>
    %3 = arith.truncf %2 : vector<4x32xf32> to vector<4x32xbf16>
    %cst = arith.constant dense<0.000000e+00> : vector<16x32xf32>
    %4 = tpu.matmul %1, %3, %cst {dimension_numbers = #tpu.dot_dimension_numbers<[1], [0], [0], [1], [0, 0, 1, 1], [], []>} : vector<16x4xbf16>, vector<4x32xbf16>, vector<16x32xf32> -> vector<16x32xf32>
    %c0_3 = arith.constant 0 : index
    %c0_4 = arith.constant 0 : index
    %5 = vector.load %arg3[%c0_3, %c0_4] : memref<1x32xf32, #tpu.memory_space<vmem>>, vector<1x32xf32>
    %6 = vector.broadcast %5 : vector<1x32xf32> to vector<16x32xf32>
    %7 = arith.addf %4, %6 : vector<16x32xf32>
    %c0_5 = arith.constant 0 : index
    %c0_6 = arith.constant 0 : index
    %8 = vector.load %arg4[%c0_5, %c0_6] : memref<16x32xf32, #tpu.memory_space<vmem>>, vector<16x32xf32>
    tpu.vector_store %arg4[%c0_5, %c0_6], %7 {strides = array<i32>} : memref<16x32xf32, #tpu.memory_space<vmem>>, vector<16x32xf32>,
    return
  }
  func.func @transform_0(%arg0: i32) -> (i32, i32) {
    %c0_i32 = arith.constant 0 : i32
    %c0_i32_0 = arith.constant 0 : i32
    return %arg0, %c0_i32 : i32, i32
  }
  func.func @transform_1(%arg0: i32) -> (i32, i32) {
    %c0_i32 = arith.constant 0 : i32
    %c0_i32_0 = arith.constant 0 : i32
    %c0_i32_1 = arith.constant 0 : i32
    return %c0_i32, %c0_i32_0 : i32, i32
  }
  func.func @transform_2(%arg0: i32) -> (i32, i32) {
    %c0_i32 = arith.constant 0 : i32
    %c0_i32_0 = arith.constant 0 : i32
    %c0_i32_1 = arith.constant 0 : i32
    return %c0_i32, %c0_i32_0 : i32, i32
  }
  func.func @transform_3(%arg0: i32) -> (i32, i32) {
    %c0_i32 = arith.constant 0 : i32
    %c0_i32_0 = arith.constant 0 : i32
    return %arg0, %c0_i32 : i32, i32
  }
}

module attributes {stable_mosaic.version = 11 : i64} {
  func.func @_linear_kernel(%arg0: i32, %arg1: memref<16x32xf32, #tpu.memory_space<vmem>>, %arg2: memref<32x64xf32, #tpu.memory_space<vmem>>, %arg3: memref<1x64xf32, #tpu.memory_space<vmem>>, %arg4: memref<16x64xf32, #tpu.memory_space<vmem>>) attributes {dimension_semantics = [#tpu.dimension_semantics<parallel>], iteration_bounds = array<i64: 1>, scalar_prefetch = 0 : i64, scratch_operands = 0 : i64, tpu.core_type = #tpu.core_type<tc>, window_params = [{transform_indices = @transform_0, window_bounds = array<i64: 16, 32>}, {pipeline_mode = #tpu.pipeline_mode<synchronous>, transform_indices = @transform_1, window_bounds = array<i64: 32, 64>}, {pipeline_mode = #tpu.pipeline_mode<synchronous>, transform_indices = @transform_2, window_bounds = array<i64: 1, 64>}, {transform_indices = @transform_3, window_bounds = array<i64: 16, 64>}]} {
    %c0 = arith.constant 0 : index
    %c0_0 = arith.constant 0 : index
    %0 = vector.load %arg1[%c0, %c0_0] : memref<16x32xf32, #tpu.memory_space<vmem>>, vector<16x32xf32>
    %1 = arith.truncf %0 : vector<16x32xf32> to vector<16x32xbf16>
    %c0_1 = arith.constant 0 : index
    %c0_2 = arith.constant 0 : index
    %2 = vector.load %arg2[%c0_1, %c0_2] : memref<32x64xf32, #tpu.memory_space<vmem>>, vector<32x64xf32>
    %3 = arith.truncf %2 : vector<32x64xf32> to vector<32x64xbf16>
    %cst = arith.constant dense<0.000000e+00> : vector<16x64xf32>
    %4 = tpu.matmul %1, %3, %cst {dimension_numbers = #tpu.dot_dimension_numbers<[1], [0], [0], [1], [0, 0, 1, 1], [], []>} : vector<16x32xbf16>, vector<32x64xbf16>, vector<16x64xf32> -> vector<16x64xf32>
    %c0_3 = arith.constant 0 : index
    %c0_4 = arith.constant 0 : index
    %5 = vector.load %arg3[%c0_3, %c0_4] : memref<1x64xf32, #tpu.memory_space<vmem>>, vector<1x64xf32>
    %6 = vector.broadcast %5 : vector<1x64xf32> to vector<16x64xf32>
    %7 = arith.addf %4, %6 : vector<16x64xf32>
    %c0_5 = arith.constant 0 : index
    %c0_6 = arith.constant 0 : index
    %8 = vector.load %arg4[%c0_5, %c0_6] : memref<16x64xf32, #tpu.memory_space<vmem>>, vector<16x64xf32>
    tpu.vector_store %arg4[%c0_5, %c0_6], %7 {strides = array<i32>} : memref<16x64xf32, #tpu.memory_space<vmem>>, vector<16x64xf32>,
    return
  }
  func.func @transform_0(%arg0: i32) -> (i32, i32) {
    %c0_i32 = arith.constant 0 : i32
    %c0_i32_0 = arith.constant 0 : i32
    return %arg0, %c0_i32 : i32, i32
  }
  func.func @transform_1(%arg0: i32) -> (i32, i32) {
    %c0_i32 = arith.constant 0 : i32
    %c0_i32_0 = arith.constant 0 : i32
    %c0_i32_1 = arith.constant 0 : i32
    return %c0_i32, %c0_i32_0 : i32, i32
  }
  func.func @transform_2(%arg0: i32) -> (i32, i32) {
    %c0_i32 = arith.constant 0 : i32
    %c0_i32_0 = arith.constant 0 : i32
    %c0_i32_1 = arith.constant 0 : i32
    return %c0_i32, %c0_i32_0 : i32, i32
  }
  func.func @transform_3(%arg0: i32) -> (i32, i32) {
    %c0_i32 = arith.constant 0 : i32
    %c0_i32_0 = arith.constant 0 : i32
    return %arg0, %c0_i32 : i32, i32
  }
}

module attributes {stable_mosaic.version = 11 : i64} {
  func.func @_pna_layer_kernel(%arg0: i32, %arg1: i32, %arg2: memref<1x8x32xf32, #tpu.memory_space<vmem>>, %arg3: memref<1x8x32xf32, #tpu.memory_space<vmem>>, %arg4: memref<1x8x32xf32, #tpu.memory_space<vmem>>, %arg5: memref<1x8x8x4xbf16, #tpu.memory_space<vmem>>, %arg6: memref<1x8x8xf32, #tpu.memory_space<vmem>>, %arg7: memref<4x32xbf16, #tpu.memory_space<vmem>>, %arg8: memref<32x32xbf16, #tpu.memory_space<vmem>>, %arg9: memref<384x32xbf16, #tpu.memory_space<vmem>>, %arg10: memref<1x32xf32, #tpu.memory_space<vmem>>, %arg11: memref<1x8x32xf32, #tpu.memory_space<vmem>>) attributes {dimension_semantics = [#tpu.dimension_semantics<parallel>, #tpu.dimension_semantics<parallel>], iteration_bounds = array<i64: 2, 1>, scalar_prefetch = 0 : i64, scratch_operands = 0 : i64, tpu.core_type = #tpu.core_type<tc>, window_params = [{transform_indices = @transform_0, window_bounds = array<i64: 1, 8, 32>}, {transform_indices = @transform_1, window_bounds = array<i64: 1, 8, 32>}, {transform_indices = @transform_2, window_bounds = array<i64: 1, 8, 32>}, {transform_indices = @transform_3, window_bounds = array<i64: 1, 8, 8, 4>}, {transform_indices = @transform_4, window_bounds = array<i64: 1, 8, 8>}, {pipeline_mode = #tpu.pipeline_mode<synchronous>, transform_indices = @transform_5, window_bounds = array<i64: 4, 32>}, {pipeline_mode = #tpu.pipeline_mode<synchronous>, transform_indices = @transform_6, window_bounds = array<i64: 32, 32>}, {pipeline_mode = #tpu.pipeline_mode<synchronous>, transform_indices = @transform_7, window_bounds = array<i64: 384, 32>}, {pipeline_mode = #tpu.pipeline_mode<synchronous>, transform_indices = @transform_8, window_bounds = array<i64: 1, 32>}, {transform_indices = @transform_9, window_bounds = array<i64: 1, 8, 32>}]} {
    %c0 = arith.constant 0 : index
    %c0_0 = arith.constant 0 : index
    %c0_1 = arith.constant 0 : index
    %0 = vector.load %arg2[%c0, %c0_0, %c0_1] : memref<1x8x32xf32, #tpu.memory_space<vmem>>, vector<1x8x32xf32>
    %1 = vector.shape_cast %0 : vector<1x8x32xf32> to vector<8x32xf32>
    %c0_2 = arith.constant 0 : index
    %c0_3 = arith.constant 0 : index
    %c0_4 = arith.constant 0 : index
    %2 = vector.load %arg3[%c0_2, %c0_3, %c0_4] : memref<1x8x32xf32, #tpu.memory_space<vmem>>, vector<1x8x32xf32>
    %3 = vector.shape_cast %2 : vector<1x8x32xf32> to vector<8x32xf32>
    %c0_5 = arith.constant 0 : index
    %c0_6 = arith.constant 0 : index
    %c0_7 = arith.constant 0 : index
    %4 = vector.load %arg4[%c0_5, %c0_6, %c0_7] : memref<1x8x32xf32, #tpu.memory_space<vmem>>, vector<1x8x32xf32>
    %5 = vector.shape_cast %4 : vector<1x8x32xf32> to vector<8x32xf32>
    %c0_8 = arith.constant 0 : index
    %c0_9 = arith.constant 0 : index
    %c0_10 = arith.constant 0 : index
    %6 = vector.load %arg6[%c0_8, %c0_9, %c0_10] : memref<1x8x8xf32, #tpu.memory_space<vmem>>, vector<1x8x8xf32>
    %7 = vector.shape_cast %6 : vector<1x8x8xf32> to vector<8x8xf32>
    %c0_11 = arith.constant 0 : index
    %c0_12 = arith.constant 0 : index
    %c0_13 = arith.constant 0 : index
    %c0_14 = arith.constant 0 : index
    %8 = vector.load %arg5[%c0_11, %c0_12, %c0_13, %c0_14] : memref<1x8x8x4xbf16, #tpu.memory_space<vmem>>, vector<1x8x8x4xbf16>
    %9 = vector.shape_cast %8 : vector<1x8x8x4xbf16> to vector<8x8x4xbf16>
    %10 = vector.shape_cast %9 : vector<8x8x4xbf16> to vector<64x4xbf16>
    %c0_15 = arith.constant 0 : index
    %c0_16 = arith.constant 0 : index
    %11 = vector.load %arg7[%c0_15, %c0_16] : memref<4x32xbf16, #tpu.memory_space<vmem>>, vector<4x32xbf16>
    %cst = arith.constant dense<0.000000e+00> : vector<64x32xf32>
    %12 = tpu.matmul %10, %11, %cst {dimension_numbers = #tpu.dot_dimension_numbers<[1], [0], [0], [1], [0, 0, 1, 1], [], []>} : vector<64x4xbf16>, vector<4x32xbf16>, vector<64x32xf32> -> vector<64x32xf32>
    %13 = vector.shape_cast %12 : vector<64x32xf32> to vector<8x8x32xf32>
    %14 = vector.shape_cast %3 : vector<8x32xf32> to vector<1x8x32xf32>
    %15 = vector.broadcast %14 : vector<1x8x32xf32> to vector<8x8x32xf32>
    %16 = arith.addf %13, %15 : vector<8x8x32xf32>
    %17 = vector.shape_cast %5 : vector<8x32xf32> to vector<8x1x32xf32>
    %18 = vector.broadcast %17 : vector<8x1x32xf32> to vector<8x8x32xf32>
    %19 = arith.addf %16, %18 : vector<8x8x32xf32>
    %20 = vector.shape_cast %7 : vector<8x8xf32> to vector<8x8x1xf32>
    %cst_17 = arith.constant 0.000000e+00 : f32
    %21 = vector.broadcast %cst_17 : f32 to vector<8x8x1xf32>
    %22 = arith.cmpf one, %20, %21 : vector<8x8x1xf32>
    %cst_18 = arith.constant dense<0.000000e+00> : vector<8xf32>
    %23 = vector.multi_reduction <add>, %7, %cst_18 [1] : vector<8x8xf32> to vector<8xf32>
    %24 = vector.shape_cast %23 : vector<8xf32> to vector<8x1xf32>
    %cst_19 = arith.constant 0.000000e+00 : f32
    %25 = vector.broadcast %cst_19 : f32 to vector<8x1xf32>
    %26 = arith.cmpf ogt, %24, %25 : vector<8x1xf32>
    %cst_20 = arith.constant 1.000000e+00 : f32
    %27 = vector.broadcast %cst_20 : f32 to vector<8x1xf32>
    %28 = arith.maximumf %24, %27 : vector<8x1xf32>
    %cst_21 = arith.constant 1.000000e+00 : f32
    %29 = vector.broadcast %cst_21 : f32 to vector<8x1xf32>
    %30 = arith.divf %29, %28 : vector<8x1xf32>
    %cst_22 = arith.constant 0.000000e+00 : f32
    %cst_23 = arith.constant 1.000000e+30 : f32
    %31 = arith.subf %cst_22, %cst_23 : f32
    %32 = vector.shape_cast %22 : vector<8x8x1xi1> to vector<8x8x1xi1>
    %33 = vector.broadcast %32 : vector<8x8x1xi1> to vector<8x8x32xi1>
    %34 = vector.broadcast %31 : f32 to vector<8x8x32xf32>
    %35 = arith.select %33, %19, %34 : vector<8x8x32xi1>, vector<8x8x32xf32>
    %cst_24 = arith.constant dense<0xFF800000> : vector<8x32xf32>
    %36 = vector.multi_reduction <maximumf>, %35, %cst_24 [1] : vector<8x8x32xf32> to vector<8x32xf32>
    %cst_25 = arith.constant 1.000000e+30 : f32
    %37 = vector.shape_cast %22 : vector<8x8x1xi1> to vector<8x8x1xi1>
    %38 = vector.broadcast %37 : vector<8x8x1xi1> to vector<8x8x32xi1>
    %39 = vector.broadcast %cst_25 : f32 to vector<8x8x32xf32>
    %40 = arith.select %38, %19, %39 : vector<8x8x32xi1>, vector<8x8x32xf32>
    %cst_26 = arith.constant dense<0x7F800000> : vector<8x32xf32>
    %41 = vector.multi_reduction <minimumf>, %40, %cst_26 [1] : vector<8x8x32xf32> to vector<8x32xf32>
    %cst_27 = arith.constant 0.000000e+00 : f32
    %42 = vector.shape_cast %26 : vector<8x1xi1> to vector<8x1xi1>
    %43 = vector.broadcast %42 : vector<8x1xi1> to vector<8x32xi1>
    %44 = vector.broadcast %cst_27 : f32 to vector<8x32xf32>
    %45 = arith.select %43, %36, %44 : vector<8x32xi1>, vector<8x32xf32>
    %cst_28 = arith.constant 0.000000e+00 : f32
    %46 = vector.shape_cast %26 : vector<8x1xi1> to vector<8x1xi1>
    %47 = vector.broadcast %46 : vector<8x1xi1> to vector<8x32xi1>
    %48 = vector.broadcast %cst_28 : f32 to vector<8x32xf32>
    %49 = arith.select %47, %41, %48 : vector<8x32xi1>, vector<8x32xf32>
    %cst_29 = arith.constant 0.000000e+00 : f32
    %50 = vector.shape_cast %22 : vector<8x8x1xi1> to vector<8x8x1xi1>
    %51 = vector.broadcast %50 : vector<8x8x1xi1> to vector<8x8x32xi1>
    %52 = vector.broadcast %cst_29 : f32 to vector<8x8x32xf32>
    %53 = arith.select %51, %19, %52 : vector<8x8x32xi1>, vector<8x8x32xf32>
    %cst_30 = arith.constant dense<0.000000e+00> : vector<8x32xf32>
    %54 = vector.multi_reduction <add>, %53, %cst_30 [1] : vector<8x8x32xf32> to vector<8x32xf32>
    %55 = vector.broadcast %30 : vector<8x1xf32> to vector<8x32xf32>
    %56 = arith.mulf %54, %55 : vector<8x32xf32>
    %57 = arith.mulf %53, %53 : vector<8x8x32xf32>
    %cst_31 = arith.constant dense<0.000000e+00> : vector<8x32xf32>
    %58 = vector.multi_reduction <add>, %57, %cst_31 [1] : vector<8x8x32xf32> to vector<8x32xf32>
    %59 = vector.broadcast %30 : vector<8x1xf32> to vector<8x32xf32>
    %60 = arith.mulf %58, %59 : vector<8x32xf32>
    %61 = arith.mulf %56, %56 : vector<8x32xf32>
    %62 = arith.subf %60, %61 : vector<8x32xf32>
    %cst_32 = arith.constant 0.000000e+00 : f32
    %63 = vector.broadcast %cst_32 : f32 to vector<8x32xf32>
    %64 = arith.maximumf %62, %63 : vector<8x32xf32>
    %cst_33 = arith.constant 9.99999974E-6 : f32
    %65 = vector.broadcast %cst_33 : f32 to vector<8x32xf32>
    %66 = arith.addf %64, %65 : vector<8x32xf32>
    %67 = math.sqrt %66 : vector<8x32xf32>
    %68 = tpu.concatenate %56, %45, %49, %67 in 1 : vector<8x32xf32>, vector<8x32xf32>, vector<8x32xf32>, vector<8x32xf32> -> vector<8x128xf32>
    %cst_34 = arith.constant 1.000000e+00 : f32
    %69 = vector.broadcast %cst_34 : f32 to vector<8x1xf32>
    %70 = arith.addf %24, %69 : vector<8x1xf32>
    %71 = math.log %70 : vector<8x1xf32>
    %cst_35 = arith.constant 1.000000e+00 : f32
    %72 = vector.broadcast %cst_35 : f32 to vector<8x1xf32>
    %73 = arith.mulf %71, %72 : vector<8x1xf32>
    %cst_36 = arith.constant 9.99999997E-7 : f32
    %74 = vector.broadcast %cst_36 : f32 to vector<8x1xf32>
    %75 = arith.maximumf %71, %74 : vector<8x1xf32>
    %76 = tpu.reciprocal %75 {approx = true} : vector<8x1xf32> -> vector<8x1xf32>
    %cst_37 = arith.constant 1.000000e+00 : f32
    %77 = vector.broadcast %cst_37 : f32 to vector<8x1xf32>
    %78 = arith.mulf %77, %76 : vector<8x1xf32>
    %79 = vector.broadcast %73 : vector<8x1xf32> to vector<8x128xf32>
    %80 = arith.mulf %68, %79 : vector<8x128xf32>
    %81 = vector.broadcast %78 : vector<8x1xf32> to vector<8x128xf32>
    %82 = arith.mulf %68, %81 : vector<8x128xf32>
    %83 = tpu.concatenate %68, %80, %82 in 1 : vector<8x128xf32>, vector<8x128xf32>, vector<8x128xf32> -> vector<8x384xf32>
    %84 = arith.truncf %1 : vector<8x32xf32> to vector<8x32xbf16>
    %c0_38 = arith.constant 0 : index
    %c0_39 = arith.constant 0 : index
    %85 = vector.load %arg8[%c0_38, %c0_39] : memref<32x32xbf16, #tpu.memory_space<vmem>>, vector<32x32xbf16>
    %cst_40 = arith.constant dense<0.000000e+00> : vector<8x32xf32>
    %86 = tpu.matmul %84, %85, %cst_40 {dimension_numbers = #tpu.dot_dimension_numbers<[1], [0], [0], [1], [0, 0, 1, 1], [], []>} : vector<8x32xbf16>, vector<32x32xbf16>, vector<8x32xf32> -> vector<8x32xf32>
    %87 = arith.truncf %83 : vector<8x384xf32> to vector<8x384xbf16>
    %c0_41 = arith.constant 0 : index
    %c0_42 = arith.constant 0 : index
    %88 = vector.load %arg9[%c0_41, %c0_42] : memref<384x32xbf16, #tpu.memory_space<vmem>>, vector<384x32xbf16>
    %cst_43 = arith.constant dense<0.000000e+00> : vector<8x32xf32>
    %89 = tpu.matmul %87, %88, %cst_43 {dimension_numbers = #tpu.dot_dimension_numbers<[1], [0], [0], [1], [0, 0, 1, 1], [], []>} : vector<8x384xbf16>, vector<384x32xbf16>, vector<8x32xf32> -> vector<8x32xf32>
    %90 = arith.addf %86, %89 : vector<8x32xf32>
    %c0_44 = arith.constant 0 : index
    %c0_45 = arith.constant 0 : index
    %91 = vector.load %arg10[%c0_44, %c0_45] : memref<1x32xf32, #tpu.memory_space<vmem>>, vector<1x32xf32>
    %92 = vector.broadcast %91 : vector<1x32xf32> to vector<8x32xf32>
    %93 = arith.addf %90, %92 : vector<8x32xf32>
    %94 = arith.addf %93, %1 : vector<8x32xf32>
    %c0_46 = arith.constant 0 : index
    %c0_47 = arith.constant 0 : index
    %c0_48 = arith.constant 0 : index
    %95 = vector.load %arg11[%c0_46, %c0_47, %c0_48] : memref<1x8x32xf32, #tpu.memory_space<vmem>>, vector<1x8x32xf32>
    %96 = vector.shape_cast %95 : vector<1x8x32xf32> to vector<8x32xf32>
    %97 = vector.shape_cast %94 : vector<8x32xf32> to vector<1x8x32xf32>
    tpu.vector_store %arg11[%c0_46, %c0_47, %c0_48], %97 {strides = array<i32>} : memref<1x8x32xf32, #tpu.memory_space<vmem>>, vector<1x8x32xf32>,
    return
  }
  func.func @transform_0(%arg0: i32, %arg1: i32) -> (i32, i32, i32) {
    %c0_i32 = arith.constant 0 : i32
    %c0_i32_0 = arith.constant 0 : i32
    return %arg0, %arg1, %c0_i32 : i32, i32, i32
  }
  func.func @transform_1(%arg0: i32, %arg1: i32) -> (i32, i32, i32) {
    %c0_i32 = arith.constant 0 : i32
    %c0_i32_0 = arith.constant 0 : i32
    %c0_i32_1 = arith.constant 0 : i32
    return %arg0, %c0_i32, %c0_i32_0 : i32, i32, i32
  }
  func.func @transform_2(%arg0: i32, %arg1: i32) -> (i32, i32, i32) {
    %c0_i32 = arith.constant 0 : i32
    %c0_i32_0 = arith.constant 0 : i32
    return %arg0, %arg1, %c0_i32 : i32, i32, i32
  }
  func.func @transform_3(%arg0: i32, %arg1: i32) -> (i32, i32, i32, i32) {
    %c0_i32 = arith.constant 0 : i32
    %c0_i32_0 = arith.constant 0 : i32
    %c0_i32_1 = arith.constant 0 : i32
    return %arg0, %arg1, %c0_i32, %c0_i32_0 : i32, i32, i32, i32
  }
  func.func @transform_4(%arg0: i32, %arg1: i32) -> (i32, i32, i32) {
    %c0_i32 = arith.constant 0 : i32
    %c0_i32_0 = arith.constant 0 : i32
    return %arg0, %arg1, %c0_i32 : i32, i32, i32
  }
  func.func @transform_5(%arg0: i32, %arg1: i32) -> (i32, i32) {
    %c0_i32 = arith.constant 0 : i32
    %c0_i32_0 = arith.constant 0 : i32
    %c0_i32_1 = arith.constant 0 : i32
    return %c0_i32, %c0_i32_0 : i32, i32
  }
  func.func @transform_6(%arg0: i32, %arg1: i32) -> (i32, i32) {
    %c0_i32 = arith.constant 0 : i32
    %c0_i32_0 = arith.constant 0 : i32
    %c0_i32_1 = arith.constant 0 : i32
    return %c0_i32, %c0_i32_0 : i32, i32
  }
  func.func @transform_7(%arg0: i32, %arg1: i32) -> (i32, i32) {
    %c0_i32 = arith.constant 0 : i32
    %c0_i32_0 = arith.constant 0 : i32
    %c0_i32_1 = arith.constant 0 : i32
    return %c0_i32, %c0_i32_0 : i32, i32
  }
  func.func @transform_8(%arg0: i32, %arg1: i32) -> (i32, i32) {
    %c0_i32 = arith.constant 0 : i32
    %c0_i32_0 = arith.constant 0 : i32
    %c0_i32_1 = arith.constant 0 : i32
    return %c0_i32, %c0_i32_0 : i32, i32
  }
  func.func @transform_9(%arg0: i32, %arg1: i32) -> (i32, i32, i32) {
    %c0_i32 = arith.constant 0 : i32
    %c0_i32_0 = arith.constant 0 : i32
    return %arg0, %arg1, %c0_i32 : i32, i32, i32
  }
}

</mosaic_0001>

<llo_original>
// kernel: fwd.11
$region0: #{fwd.11}
  #allocation0 [shape = 'u32[]', space=smem, size = 0x4, offset = 0x4, fixed_abs, tag = 'smem constant byte address 0x4 - core index']
  #allocation1 [shape = 'u32[144,128]{1,0:T(1,128)}', space=vmem, size = 0x12000, scoped, tag = 'internal scratch']
  %s0 = inlined_call_operand.vmem [shape: f32[16,32], index: 0, kind: input, shape index: {}]
  %s1 = inlined_call_operand.vmem [shape: f32[32,64], index: 1, kind: input, shape index: {}]
  %s2 = inlined_call_operand.vmem [shape: f32[1,64], index: 2, kind: input, shape index: {}]
  %s3 = inlined_call_operand.vmem [shape: f32[16,64], index: 3, kind: output, shape index: {}]
  %s4 = sld [smem:[#allocation0]]
  $region22: #{fwd.11} parent=0
    _
  %s6 = ssub.s32 1, %s4
  %s7 = scalar_select 0, %s6, %s4
  // Predicated region
  $region2: #{fwd.11} parent=0 // pred_check
    _
  $region3: #{fwd.11} parent=0 // pred_check_branch
    %9 = sbr.rel (0) target = $region5
  $region4: #{fwd.11} parent=0 // pred_region
    _
  $region5: #{fwd.11} parent=0 // pred_fallthru
    _
  // Predicated region
  $region6: #{fwd.11} parent=0 // pred_check
    _
  $region7: #{fwd.11} parent=0 // pred_check_branch
    %11 = sbr.rel (0) target = $region9
  $region8: #{fwd.11} parent=0 // pred_region
    _
  $region9: #{fwd.11} parent=0 // pred_fallthru
    _
  // Predicated region
  $region10: #{fwd.11} parent=0 // pred_check
    _
  $region11: #{fwd.11} parent=0 // pred_check_branch
    %13 = sbr.rel (0) target = $region13
  $region12: #{fwd.11} parent=0 // pred_region
    _
  $region13: #{fwd.11} parent=0 // pred_fallthru
    _
  %v15 = vld [vmem:[%s0] sm:$0xff]
  %v16 = vld [vmem:[%s0 + $0x8] sm:$0xff]
  %v17 = vpack.c.bf16 %v16, %v15
  %v18 = vld [vmem:[%s1] sm:$0xff]
  %v19 = vld [vmem:[%s1 + $0x8] sm:$0xff]
  %v20 = vld [vmem:[%s1 + $0x10] sm:$0xff]
  %v21 = vld [vmem:[%s1 + $0x18] sm:$0xff]
  %v22 = vpack.c.bf16 %v19, %v18
  %v23 = vpack.c.bf16 %v21, %v20
  %v24 = vld [vmem:[%s2] sm:$0x1]
  %v26 = vlaneseq
  %v27 = vshrl.u32 %v26, 7
  %v28 = vsub.s32 0, %v27
  %v29 = vrot.slane %v24, %v28
  %vm31 = vcmask 261120
  %v33 = vsel %vm31, %v17, 0
  %35 = vmatprep.subr.bf16.mxu0 0
  %36 = vmatpush1.bf16.msra.mxu0 0
  %37 = vmatprep.subr.bf16.mxu0 0
  %38 = vmatpush1.bf16.msra.mxu0 0
  %39 = vmatprep.subr.bf16.mxu0 0
  %40 = vmatpush1.bf16.msra.mxu0 0
  %41 = vmatprep.subr.bf16.mxu0 0
  %42 = vmatpush1.bf16.msra.mxu0 0
  %43 = vmatprep.subr.bf16.mxu0 0
  %44 = vmatpush1.bf16.msra.mxu0 0
  %45 = vmatprep.subr.bf16.mxu0 0
  %46 = vmatpush1.bf16.msra.mxu0 0
  %47 = vmatprep.subr.bf16.mxu0 0
  %48 = vmatpush1.bf16.msra.mxu0 %v23
  %49 = vmatprep.subr.bf16.mxu0 0
  %50 = vmatpush1.bf16.msra.mxu0 %v22
  %51 = vmatprep.subr.bf16.mxu0 0
  %52 = vmatpush2.bf16.msra.mxu0 0
  %53 = vmatprep.subr.bf16.mxu0 0
  %54 = vmatpush2.bf16.msra.mxu0 0
  %55 = vmatprep.subr.bf16.mxu0 0
  %56 = vmatpush2.bf16.msra.mxu0 0
  %57 = vmatprep.subr.bf16.mxu0 0
  %58 = vmatpush2.bf16.msra.mxu0 0
  %59 = vmatprep.subr.bf16.mxu0 0
  %60 = vmatpush2.bf16.msra.mxu0 0
  %61 = vmatprep.subr.bf16.mxu0 0
  %62 = vmatpush2.bf16.msra.mxu0 0
  %63 = vmatprep.subr.bf16.mxu0 0
  %64 = vmatpush2.bf16.msra.mxu0 0
  %65 = vmatprep.subr.bf16.mxu0 0
  %66 = vmatpush2.bf16.msra.mxu0 0
  %67 = vmatprep.mubr.bf16.mxu0 0
  %68 = vmatmul.mubr.bf16.gmra.mxu0 %v33
  %v69 = vpop.f32.mrf.mxu0
  %v70 = vadd.f32 %v29, %v69
  %v71 = vpop.f32.mrf.mxu0
  %v72 = vpop.f32.mrf.mxu0
  %v73 = vadd.f32 %v29, %v72
  %v74 = vpop.f32.mrf.mxu0
  %75 = vdwg.mxu0
  %vm76 = vcmask 523264
  %77 = vst.msk [vmem:[%s3] sm:$0xff] %vm76, %v70
  %78 = vst.msk [vmem:[%s3 + $0x8] sm:$0xff] %vm76, %v73
  // Predicated region
  $region14: #{fwd.11} parent=0 // pred_check
    _
  $region15: #{fwd.11} parent=0 // pred_check_branch
    %80 = sbr.rel (0) target = $region17
  $region16: #{fwd.11} parent=0 // pred_region
    _
  $region17: #{fwd.11} parent=0 // pred_fallthru
    _
  // Predicated region
  $region18: #{fwd.11} parent=0 // pred_check
    _
  $region19: #{fwd.11} parent=0 // pred_check_branch
    %82 = sbr.rel (0) target = $region21
  $region20: #{fwd.11} parent=0 // pred_region
    _
  $region21: #{fwd.11} parent=0 // pred_fallthru
    _

// kernel: fwd.10
$region0: #{fwd.10}
  #allocation0 [shape = 'u32[]', space=smem, size = 0x4, offset = 0x4, fixed_abs, tag = 'smem constant byte address 0x4 - core index']
  #allocation1 [shape = 'u32[144,128]{1,0:T(1,128)}', space=vmem, size = 0x12000, scoped, tag = 'internal scratch']
  %s0 = inlined_call_operand.vmem [shape: f32[16,4], index: 0, kind: input, shape index: {}]
  %s1 = inlined_call_operand.vmem [shape: f32[4,32], index: 1, kind: input, shape index: {}]
  %s2 = inlined_call_operand.vmem [shape: f32[1,32], index: 2, kind: input, shape index: {}]
  %s3 = inlined_call_operand.vmem [shape: f32[16,32], index: 3, kind: output, shape index: {}]
  %s4 = sld [smem:[#allocation0]]
  $region22: #{fwd.10} parent=0
    _
  %s6 = ssub.s32 1, %s4
  %s7 = scalar_select 0, %s6, %s4
  // Predicated region
  $region2: #{fwd.10} parent=0 // pred_check
    _
  $region3: #{fwd.10} parent=0 // pred_check_branch
    %9 = sbr.rel (0) target = $region5
  $region4: #{fwd.10} parent=0 // pred_region
    _
  $region5: #{fwd.10} parent=0 // pred_fallthru
    _
  // Predicated region
  $region6: #{fwd.10} parent=0 // pred_check
    _
  $region7: #{fwd.10} parent=0 // pred_check_branch
    %11 = sbr.rel (0) target = $region9
  $region8: #{fwd.10} parent=0 // pred_region
    _
  $region9: #{fwd.10} parent=0 // pred_fallthru
    _
  // Predicated region
  $region10: #{fwd.10} parent=0 // pred_check
    _
  $region11: #{fwd.10} parent=0 // pred_check_branch
    %13 = sbr.rel (0) target = $region13
  $region12: #{fwd.10} parent=0 // pred_region
    _
  $region13: #{fwd.10} parent=0 // pred_fallthru
    _
  %v15 = vld [vmem:[%s0] sm:$0xff]
  %v16 = vld [vmem:[%s0 + $0x8] sm:$0xff]
  %v17 = vpack.c.bf16 %v16, %v15
  %v18 = vld [vmem:[%s1] sm:$0xf]
  %v19 = vpack.c.bf16 %v18, %v18
  %v20 = vld [vmem:[%s2] sm:$0x1]
  %v22 = vlaneseq
  %v23 = vshrl.u32 %v22, 7
  %v24 = vsub.s32 0, %v23
  %v25 = vrot.slane %v20, %v24
  %vm27 = vcmask 31744
  %v29 = vsel %vm27, %v17, 0
  %vm31 = vcmask 1041408
  %v33 = vsel %vm31, %v19, 0
  %35 = vmatprep.subr.bf16.mxu0 0
  %36 = vmatpush1.bf16.msra.mxu0 0
  %37 = vmatprep.subr.bf16.mxu0 0
  %38 = vmatpush1.bf16.msra.mxu0 0
  %39 = vmatprep.subr.bf16.mxu0 0
  %40 = vmatpush1.bf16.msra.mxu0 0
  %41 = vmatprep.subr.bf16.mxu0 0
  %42 = vmatpush1.bf16.msra.mxu0 0
  %43 = vmatprep.subr.bf16.mxu0 0
  %44 = vmatpush1.bf16.msra.mxu0 0
  %45 = vmatprep.subr.bf16.mxu0 0
  %46 = vmatpush1.bf16.msra.mxu0 0
  %47 = vmatprep.subr.bf16.mxu0 0
  %48 = vmatpush1.bf16.msra.mxu0 0
  %49 = vmatprep.subr.bf16.mxu0 0
  %50 = vmatpush1.bf16.msra.mxu0 %v33
  %51 = vmatprep.subr.bf16.mxu0 0
  %52 = vmatpush2.bf16.msra.mxu0 0
  %53 = vmatprep.subr.bf16.mxu0 0
  %54 = vmatpush2.bf16.msra.mxu0 0
  %55 = vmatprep.subr.bf16.mxu0 0
  %56 = vmatpush2.bf16.msra.mxu0 0
  %57 = vmatprep.subr.bf16.mxu0 0
  %58 = vmatpush2.bf16.msra.mxu0 0
  %59 = vmatprep.subr.bf16.mxu0 0
  %60 = vmatpush2.bf16.msra.mxu0 0
  %61 = vmatprep.subr.bf16.mxu0 0
  %62 = vmatpush2.bf16.msra.mxu0 0
  %63 = vmatprep.subr.bf16.mxu0 0
  %64 = vmatpush2.bf16.msra.mxu0 0
  %65 = vmatprep.subr.bf16.mxu0 0
  %66 = vmatpush2.bf16.msra.mxu0 0
  %67 = vmatprep.mubr.bf16.mxu0 0
  %68 = vmatmul.mubr.bf16.gmra.mxu0 %v29
  %v69 = vpop.f32.mrf.mxu0
  %v70 = vadd.f32 %v25, %v69
  %v71 = vpop.f32.mrf.mxu0
  %v72 = vpop.f32.mrf.mxu0
  %v73 = vadd.f32 %v25, %v72
  %v74 = vpop.f32.mrf.mxu0
  %75 = vdwg.mxu0
  %vm76 = vcmask 261120
  %77 = vst.msk [vmem:[%s3] sm:$0xff] %vm76, %v70
  %78 = vst.msk [vmem:[%s3 + $0x8] sm:$0xff] %vm76, %v73
  // Predicated region
  $region14: #{fwd.10} parent=0 // pred_check
    _
  $region15: #{fwd.10} parent=0 // pred_check_branch
    %80 = sbr.rel (0) target = $region17
  $region16: #{fwd.10} parent=0 // pred_region
    _
  $region17: #{fwd.10} parent=0 // pred_fallthru
    _
  // Predicated region
  $region18: #{fwd.10} parent=0 // pred_check
    _
  $region19: #{fwd.10} parent=0 // pred_check_branch
    %82 = sbr.rel (0) target = $region21
  $region20: #{fwd.10} parent=0 // pred_region
    _
  $region21: #{fwd.10} parent=0 // pred_fallthru
    _

// kernel: fwd.12
$region0: #{fwd.12}
  #allocation0 [shape = 'u32[]', space=smem, size = 0x4, offset = 0x4, fixed_abs, tag = 'smem constant byte address 0x4 - core index']
  #allocation1 [shape = 'u32[144,128]{1,0:T(1,128)}', space=vmem, size = 0x12000, scoped, tag = 'internal scratch']
  %s0 = inlined_call_operand.vmem [shape: f32[2,8,32], index: 0, kind: input, shape index: {}]
  %s1 = inlined_call_operand.vmem [shape: f32[2,8,32], index: 1, kind: input, shape index: {}]
  %s2 = inlined_call_operand.vmem [shape: f32[2,8,32], index: 2, kind: input, shape index: {}]
  %s3 = inlined_call_operand.vmem [shape: bf16[2,8,8,4], index: 3, kind: input, shape index: {}]
  %s4 = inlined_call_operand.vmem [shape: f32[2,8,8], index: 4, kind: input, shape index: {}]
  %s5 = inlined_call_operand.vmem [shape: bf16[4,32], index: 5, kind: input, shape index: {}]
  %s6 = inlined_call_operand.vmem [shape: bf16[32,32], index: 6, kind: input, shape index: {}]
  %s7 = inlined_call_operand.vmem [shape: bf16[384,32], index: 7, kind: input, shape index: {}]
  %s8 = inlined_call_operand.vmem [shape: f32[1,32], index: 8, kind: input, shape index: {}]
  %s9 = inlined_call_operand.vmem [shape: f32[2,8,32], index: 9, kind: output, shape index: {}]
  %s10 = sld [smem:[#allocation0]]
  $region69: #{fwd.12} parent=0
    _
  %s12 = ssub.s32 1, %s10
  %s13 = scalar_select 0, %s12, %s10
  loop: start=0, step=1, limit=4
  $region2: #{fwd.12} parent=0 // loop_pre_header
    _
  $region3: #{fwd.12} parent=0 // loop_header
    %s15 = sphi 0, %s19
    %p16 = scmp.ge.s32.totalorder %s15, 4
    %s22 = sphi 0, %s34
    %s23 = sphi 0, %s30
    %s24 = sphi 0, %s22
    %s25 = sphi 0, %s23
    %s26 = sphi 0, %s24
    %s27 = sphi 0, %s25
    %s39 = sphi 0, %s41
    %s42 = sphi 0, %s39
    %s43 = sphi 0, %s42
    %s59 = sphi 0, %s43
    %s65 = sphi 0, %s67
    %s68 = sphi 0, %s65
    %s69 = sphi 0, %s68
    %s85 = sphi 0, %s69
    %s93 = sphi 0, %s95
    %s96 = sphi 0, %s93
    %s97 = sphi 0, %s96
    %s113 = sphi 0, %s97
    %s121 = sphi 0, %s123
    %s124 = sphi 0, %s121
    %s125 = sphi 0, %s124
    %s141 = sphi 0, %s125
    %s149 = sphi 0, %s151
    %s152 = sphi 0, %s149
    %s153 = sphi 0, %s152
    %s169 = sphi 0, %s153
    %s173 = sphi 0, %s173
    %s175 = sphi 0, %s173
    %s176 = sphi 0, %s175
    %s190 = sphi 0, %s176
    %s194 = sphi 0, %s194
    %s196 = sphi 0, %s194
    %s197 = sphi 0, %s196
    %s211 = sphi 0, %s197
    %s215 = sphi 0, %s215
    %s217 = sphi 0, %s215
    %s218 = sphi 0, %s217
    %s232 = sphi 0, %s218
    %s236 = sphi 0, %s236
    %s238 = sphi 0, %s236
    %s239 = sphi 0, %s238
    %s253 = sphi 0, %s239
    %s261 = sphi 0, %s263
    %s264 = sphi 0, %s261
    %s265 = sphi 0, %s264
    %s281 = sphi 0, %s265
  $region4: #{fwd.12} parent=0 // loop_header_branch
    %18 = sbr.rel (%p16) target = $region8
  $region5: #{fwd.12} parent=0 // loop_body
    %s20 = ssub.s32 %s15, 1
    %s21 = ssub.s32 %s15, 2
    %s28 = sadd.s32 1, %s23
    %p29 = scmp.ge.s32.totalorder %s28, 1
    %s30 = scalar_select %p29, 0, %s28
    %s31 = sadd.s32 1, %s22
    %s32 = scalar_select %p29, %s31, %s22
    %p33 = scmp.ge.s32.totalorder %s32, 2
    %s34 = scalar_select %p33, 0, %s32
    %s35 = ssub.s32 %s22, %s34
    %s36 = ssub.s32 %s23, %s30
    %s37 = sor.u32 %s35, %s36
    %p38 = scmp.eq.s32.totalorder %s37, 0
    %s40 = sadd.s32 %s39, 1
    %s41 = scalar_select %p38, %s39, %s40
    %p44 = pneg %p38
    %p45 = scmp.eq.s32.totalorder %s15, 1
    %p46 = por %p44, %p45
    %p47 = scmp.ne.s32.totalorder %s39, %s42
    %p48 = scmp.eq.s32.totalorder %s15, 0
    %p49 = por %p47, %p48
    %p50 = scmp.ne.s32.totalorder %s39, %s42
    %p51 = scmp.eq.s32.totalorder %s20, 1
    %p52 = por %p50, %p51
    %p53 = scmp.ne.s32.totalorder %s42, %s43
    %p54 = scmp.eq.s32.totalorder %s20, 0
    %p55 = por %p53, %p54
    %p56 = scmp.ne.s32.totalorder %s42, %s43
    %p57 = scmp.eq.s32.totalorder %s21, 1
    %p58 = por %p56, %p57
    %p60 = scmp.ne.s32.totalorder %s43, %s59
    %p61 = scmp.eq.s32.totalorder %s21, 0
    %p62 = por %p60, %p61
    %s63 = ssub.s32 %s22, %s34
    %p64 = scmp.eq.s32.totalorder %s63, 0
    %s66 = sadd.s32 %s65, 1
    %s67 = scalar_select %p64, %s65, %s66
    %p70 = pneg %p64
    %p71 = scmp.eq.s32.totalorder %s15, 1
    %p72 = por %p70, %p71
    %p73 = scmp.ne.s32.totalorder %s65, %s68
    %p74 = scmp.eq.s32.totalorder %s15, 0
    %p75 = por %p73, %p74
    %p76 = scmp.ne.s32.totalorder %s65, %s68
    %p77 = scmp.eq.s32.totalorder %s20, 1
    %p78 = por %p76, %p77
    %p79 = scmp.ne.s32.totalorder %s68, %s69
    %p80 = scmp.eq.s32.totalorder %s20, 0
    %p81 = por %p79, %p80
    %p82 = scmp.ne.s32.totalorder %s68, %s69
    %p83 = scmp.eq.s32.totalorder %s21, 1
    %p84 = por %p82, %p83
    %p86 = scmp.ne.s32.totalorder %s69, %s85
    %p87 = scmp.eq.s32.totalorder %s21, 0
    %p88 = por %p86, %p87
    %s89 = ssub.s32 %s22, %s34
    %s90 = ssub.s32 %s23, %s30
    %s91 = sor.u32 %s89, %s90
    %p92 = scmp.eq.s32.totalorder %s91, 0
    %s94 = sadd.s32 %s93, 1
    %s95 = scalar_select %p92, %s93, %s94
    %p98 = pneg %p92
    %p99 = scmp.eq.s32.totalorder %s15, 1
    %p100 = por %p98, %p99
    %p101 = scmp.ne.s32.totalorder %s93, %s96
    %p102 = scmp.eq.s32.totalorder %s15, 0
    %p103 = por %p101, %p102
    %p104 = scmp.ne.s32.totalorder %s93, %s96
    %p105 = scmp.eq.s32.totalorder %s20, 1
    %p106 = por %p104, %p105
    %p107 = scmp.ne.s32.totalorder %s96, %s97
    %p108 = scmp.eq.s32.totalorder %s20, 0
    %p109 = por %p107, %p108
    %p110 = scmp.ne.s32.totalorder %s96, %s97
    %p111 = scmp.eq.s32.totalorder %s21, 1
    %p112 = por %p110, %p111
    %p114 = scmp.ne.s32.totalorder %s97, %s113
    %p115 = scmp.eq.s32.totalorder %s21, 0
    %p116 = por %p114, %p115
    %s117 = ssub.s32 %s22, %s34
    %s118 = ssub.s32 %s23, %s30
    %s119 = sor.u32 %s117, %s118
    %p120 = scmp.eq.s32.totalorder %s119, 0
    %s122 = sadd.s32 %s121, 1
    %s123 = scalar_select %p120, %s121, %s122
    %p126 = pneg %p120
    %p127 = scmp.eq.s32.totalorder %s15, 1
    %p128 = por %p126, %p127
    %p129 = scmp.ne.s32.totalorder %s121, %s124
    %p130 = scmp.eq.s32.totalorder %s15, 0
    %p131 = por %p129, %p130
    %p132 = scmp.ne.s32.totalorder %s121, %s124
    %p133 = scmp.eq.s32.totalorder %s20, 1
    %p134 = por %p132, %p133
    %p135 = scmp.ne.s32.totalorder %s124, %s125
    %p136 = scmp.eq.s32.totalorder %s20, 0
    %p137 = por %p135, %p136
    %p138 = scmp.ne.s32.totalorder %s124, %s125
    %p139 = scmp.eq.s32.totalorder %s21, 1
    %p140 = por %p138, %p139
    %p142 = scmp.ne.s32.totalorder %s125, %s141
    %p143 = scmp.eq.s32.totalorder %s21, 0
    %p144 = por %p142, %p143
    %s145 = ssub.s32 %s22, %s34
    %s146 = ssub.s32 %s23, %s30
    %s147 = sor.u32 %s145, %s146
    %p148 = scmp.eq.s32.totalorder %s147, 0
    %s150 = sadd.s32 %s149, 1
    %s151 = scalar_select %p148, %s149, %s150
    %p154 = pneg %p148
    %p155 = scmp.eq.s32.totalorder %s15, 1
    %p156 = por %p154, %p155
    %p157 = scmp.ne.s32.totalorder %s149, %s152
    %p158 = scmp.eq.s32.totalorder %s15, 0
    %p159 = por %p157, %p158
    %p160 = scmp.ne.s32.totalorder %s149, %s152
    %p161 = scmp.eq.s32.totalorder %s20, 1
    %p162 = por %p160, %p161
    %p163 = scmp.ne.s32.totalorder %s152, %s153
    %p164 = scmp.eq.s32.totalorder %s20, 0
    %p165 = por %p163, %p164
    %p166 = scmp.ne.s32.totalorder %s152, %s153
    %p167 = scmp.eq.s32.totalorder %s21, 1
    %p168 = por %p166, %p167
    %p170 = scmp.ne.s32.totalorder %s153, %s169
    %p171 = scmp.eq.s32.totalorder %s21, 0
    %p172 = por %p170, %p171
    %s174 = sadd.s32 %s173, 1
    %p177 = scmp.eq.s32.totalorder %s15, 1
    %p178 = scmp.ne.s32.totalorder %s173, %s175
    %p179 = scmp.eq.s32.totalorder %s15, 0
    %p180 = por %p178, %p179
    %p181 = scmp.ne.s32.totalorder %s173, %s175
    %p182 = scmp.eq.s32.totalorder %s20, 1
    %p183 = por %p181, %p182
    %p184 = scmp.ne.s32.totalorder %s175, %s176
    %p185 = scmp.eq.s32.totalorder %s20, 0
    %p186 = por %p184, %p185
    %p187 = scmp.ne.s32.totalorder %s175, %s176
    %p188 = scmp.eq.s32.totalorder %s21, 1
    %p189 = por %p187, %p188
    %p191 = scmp.ne.s32.totalorder %s176, %s190
    %p192 = scmp.eq.s32.totalorder %s21, 0
    %p193 = por %p191, %p192
    %s195 = sadd.s32 %s194, 1
    %p198 = scmp.eq.s32.totalorder %s15, 1
    %p199 = scmp.ne.s32.totalorder %s194, %s196
    %p200 = scmp.eq.s32.totalorder %s15, 0
    %p201 = por %p199, %p200
    %p202 = scmp.ne.s32.totalorder %s194, %s196
    %p203 = scmp.eq.s32.totalorder %s20, 1
    %p204 = por %p202, %p203
    %p205 = scmp.ne.s32.totalorder %s196, %s197
    %p206 = scmp.eq.s32.totalorder %s20, 0
    %p207 = por %p205, %p206
    %p208 = scmp.ne.s32.totalorder %s196, %s197
    %p209 = scmp.eq.s32.totalorder %s21, 1
    %p210 = por %p208, %p209
    %p212 = scmp.ne.s32.totalorder %s197, %s211
    %p213 = scmp.eq.s32.totalorder %s21, 0
    %p214 = por %p212, %p213
    %s216 = sadd.s32 %s215, 1
    %p219 = scmp.eq.s32.totalorder %s15, 1
    %p220 = scmp.ne.s32.totalorder %s215, %s217
    %p221 = scmp.eq.s32.totalorder %s15, 0
    %p222 = por %p220, %p221
    %p223 = scmp.ne.s32.totalorder %s215, %s217
    %p224 = scmp.eq.s32.totalorder %s20, 1
    %p225 = por %p223, %p224
    %p226 = scmp.ne.s32.totalorder %s217, %s218
    %p227 = scmp.eq.s32.totalorder %s20, 0
    %p228 = por %p226, %p227
    %p229 = scmp.ne.s32.totalorder %s217, %s218
    %p230 = scmp.eq.s32.totalorder %s21, 1
    %p231 = por %p229, %p230
    %p233 = scmp.ne.s32.totalorder %s218, %s232
    %p234 = scmp.eq.s32.totalorder %s21, 0
    %p235 = por %p233, %p234
    %s237 = sadd.s32 %s236, 1
    %p240 = scmp.eq.s32.totalorder %s15, 1
    %p241 = scmp.ne.s32.totalorder %s236, %s238
    %p242 = scmp.eq.s32.totalorder %s15, 0
    %p243 = por %p241, %p242
    %p244 = scmp.ne.s32.totalorder %s236, %s238
    %p245 = scmp.eq.s32.totalorder %s20, 1
    %p246 = por %p244, %p245
    %p247 = scmp.ne.s32.totalorder %s238, %s239
    %p248 = scmp.eq.s32.totalorder %s20, 0
    %p249 = por %p247, %p248
    %p250 = scmp.ne.s32.totalorder %s238, %s239
    %p251 = scmp.eq.s32.totalorder %s21, 1
    %p252 = por %p250, %p251
    %p254 = scmp.ne.s32.totalorder %s239, %s253
    %p255 = scmp.eq.s32.totalorder %s21, 0
    %p256 = por %p254, %p255
    %s257 = ssub.s32 %s22, %s34
    %s258 = ssub.s32 %s23, %s30
    %s259 = sor.u32 %s257, %s258
    %p260 = scmp.eq.s32.totalorder %s259, 0
    %s262 = sadd.s32 %s261, 1
    %s263 = scalar_select %p260, %s261, %s262
    %p266 = pneg %p260
    %p267 = scmp.eq.s32.totalorder %s15, 1
    %p268 = por %p266, %p267
    %p269 = scmp.ne.s32.totalorder %s261, %s264
    %p270 = scmp.eq.s32.totalorder %s15, 0
    %p271 = por %p269, %p270
    %p272 = scmp.ne.s32.totalorder %s261, %s264
    %p273 = scmp.eq.s32.totalorder %s20, 1
    %p274 = por %p272, %p273
    %p275 = scmp.ne.s32.totalorder %s264, %s265
    %p276 = scmp.eq.s32.totalorder %s20, 0
    %p277 = por %p275, %p276
    %p278 = scmp.ne.s32.totalorder %s264, %s265
    %p279 = scmp.eq.s32.totalorder %s21, 1
    %p280 = por %p278, %p279
    %p282 = scmp.ne.s32.totalorder %s265, %s281
    %p283 = scmp.eq.s32.totalorder %s21, 0
    %p284 = por %p282, %p283
    %p285 = scmp.le.s32.totalorder 1, %s15
    %p286 = scmp.lt.s32.totalorder %s15, 3
    %p287 = pnand %p285, %p286
    %p288 = pneg %p287
    // Predicated region
    $region9: #{fwd.12} parent=5 // pred_check
      _
    $region10: #{fwd.12} parent=5 // pred_check_branch
      %290 = sbr.rel (%p287) target = $region12
    $region11: #{fwd.12} parent=5 // pred_region
      %s291 = ssub.s32 %s15, 1
      // Predicated region
      $region13: #{fwd.12} parent=11 // pred_check
        %p292 = pneg %p186
      $region14: #{fwd.12} parent=11 // pred_check_branch
        %294 = sbr.rel (%p292) target = $region16
      $region15: #{fwd.12} parent=11 // pred_region
        _
      $region16: #{fwd.12} parent=11 // pred_fallthru
        _
      // Predicated region
      $region17: #{fwd.12} parent=11 // pred_check
        %p295 = pneg %p207
      $region18: #{fwd.12} parent=11 // pred_check_branch
        %297 = sbr.rel (%p295) target = $region20
      $region19: #{fwd.12} parent=11 // pred_region
        _
      $region20: #{fwd.12} parent=11 // pred_fallthru
        _
      // Predicated region
      $region21: #{fwd.12} parent=11 // pred_check
        %p298 = pneg %p228
      $region22: #{fwd.12} parent=11 // pred_check_branch
        %300 = sbr.rel (%p298) target = $region24
      $region23: #{fwd.12} parent=11 // pred_region
        _
      $region24: #{fwd.12} parent=11 // pred_fallthru
        _
      // Predicated region
      $region25: #{fwd.12} parent=11 // pred_check
        %p301 = pneg %p249
      $region26: #{fwd.12} parent=11 // pred_check_branch
        %303 = sbr.rel (%p301) target = $region28
      $region27: #{fwd.12} parent=11 // pred_region
        _
      $region28: #{fwd.12} parent=11 // pred_fallthru
        _
    $region12: #{fwd.12} parent=5 // pred_fallthru
      _
    %p304 = scmp.lt.s32.totalorder %s15, 2
    // Predicated region
    $region29: #{fwd.12} parent=5 // pred_check
      %p305 = pneg %p304
    $region30: #{fwd.12} parent=5 // pred_check_branch
      %307 = sbr.rel (%p305) target = $region32
    $region31: #{fwd.12} parent=5 // pred_region
      // Predicated region
      $region33: #{fwd.12} parent=31 // pred_check
        %p308 = pneg %p49
      $region34: #{fwd.12} parent=31 // pred_check_branch
        %310 = sbr.rel (%p308) target = $region36
      $region35: #{fwd.12} parent=31 // pred_region
        %p311 = scmp.lt.s32.totalorder %s22, 1
        %s312 = scalar_select %p311, %s22, 1
        %p313 = scmp.lt.s32.totalorder %s23, 0
        %s314 = scalar_select %p313, %s23, 0
        %s315 = sadd.s32 %s314, %s312
        %s316 = smul.addr %s315, 8
        %s317 = scalar_lea.vmem %s0, %s316
      $region36: #{fwd.12} parent=31 // pred_fallthru
        _
      // Predicated region
      $region37: #{fwd.12} parent=31 // pred_check
        %p318 = pneg %p75
      $region38: #{fwd.12} parent=31 // pred_check_branch
        %320 = sbr.rel (%p318) target = $region40
      $region39: #{fwd.12} parent=31 // pred_region
        %p321 = scmp.lt.s32.totalorder %s22, 1
        %s322 = scalar_select %p321, %s22, 1
        %s323 = smul.addr %s322, 8
        %s324 = scalar_lea.vmem %s1, %s323
      $region40: #{fwd.12} parent=31 // pred_fallthru
        _
      // Predicated region
      $region41: #{fwd.12} parent=31 // pred_check
        %p325 = pneg %p103
      $region42: #{fwd.12} parent=31 // pred_check_branch
        %327 = sbr.rel (%p325) target = $region44
      $region43: #{fwd.12} parent=31 // pred_region
        %p328 = scmp.lt.s32.totalorder %s22, 1
        %s329 = scalar_select %p328, %s22, 1
        %p330 = scmp.lt.s32.totalorder %s23, 0
        %s331 = scalar_select %p330, %s23, 0
        %s332 = sadd.s32 %s331, %s329
        %s333 = smul.addr %s332, 8
        %s334 = scalar_lea.vmem %s2, %s333
      $region44: #{fwd.12} parent=31 // pred_fallthru
        _
      // Predicated region
      $region45: #{fwd.12} parent=31 // pred_check
        %p335 = pneg %p131
      $region46: #{fwd.12} parent=31 // pred_check_branch
        %337 = sbr.rel (%p335) target = $region48
      $region47: #{fwd.12} parent=31 // pred_region
        %s338 = smul.u32 8, %s23
        %p339 = scmp.lt.s32.totalorder %s22, 1
        %s340 = scalar_select %p339, %s22, 1
        %p341 = scmp.lt.s32.totalorder %s338, 7
        %s342 = scalar_select %p341, %s338, 7
        %s343 = smul.addr %s340, 8
        %s344 = sadd.s32 %s342, %s343
        %s345 = smul.addr %s344, 4
        %s346 = scalar_lea.vmem %s3, %s345
        %s347 = smul.u32 8, %s23
      $region48: #{fwd.12} parent=31 // pred_fallthru
        _
      // Predicated region
      $region49: #{fwd.12} parent=31 // pred_check
        %p348 = pneg %p159
      $region50: #{fwd.12} parent=31 // pred_check_branch
        %350 = sbr.rel (%p348) target = $region52
      $region51: #{fwd.12} parent=31 // pred_region
        %p351 = scmp.lt.s32.totalorder %s22, 1
        %s352 = scalar_select %p351, %s22, 1
        %p353 = scmp.lt.s32.totalorder %s23, 0
        %s354 = scalar_select %p353, %s23, 0
        %s355 = sadd.s32 %s354, %s352
        %s356 = smul.addr %s355, 8
        %s357 = scalar_lea.vmem %s4, %s356
      $region52: #{fwd.12} parent=31 // pred_fallthru
        _
    $region32: #{fwd.12} parent=5 // pred_fallthru
      _
    %p358 = scmp.le.s32.totalorder 1, %s15
    %p359 = scmp.lt.s32.totalorder %s15, 3
    %p360 = pnand %p358, %p359
    %p361 = pneg %p360
    // Predicated region
    $region53: #{fwd.12} parent=5 // pred_check
      _
    $region54: #{fwd.12} parent=5 // pred_check_branch
      %363 = sbr.rel (%p360) target = $region56
    $region55: #{fwd.12} parent=5 // pred_region
      %s364 = ssub.s32 %s15, 1
      %p365 = scmp.lt.s32.totalorder %s24, 1
      %s366 = scalar_select %p365, %s24, 1
      %p367 = scmp.lt.s32.totalorder %s25, 0
      %s368 = scalar_select %p367, %s25, 0
      %s369 = sadd.s32 %s368, %s366
      %s370 = smul.addr %s369, 8
      %s371 = scalar_lea.vmem %s0, %s370
      %p372 = pneg %p55
      %p373 = pneg %p52
      %p374 = scmp.lt.s32.totalorder %s24, 1
      %s375 = scalar_select %p374, %s24, 1
      %s376 = smul.addr %s375, 8
      %s377 = scalar_lea.vmem %s1, %s376
      %p378 = pneg %p81
      %p379 = pneg %p78
      %p380 = scmp.lt.s32.totalorder %s24, 1
      %s381 = scalar_select %p380, %s24, 1
      %p382 = scmp.lt.s32.totalorder %s25, 0
      %s383 = scalar_select %p382, %s25, 0
      %s384 = sadd.s32 %s383, %s381
      %s385 = smul.addr %s384, 8
      %s386 = scalar_lea.vmem %s2, %s385
      %p387 = pneg %p109
      %p388 = pneg %p106
      %s389 = smul.u32 8, %s25
      %p390 = scmp.lt.s32.totalorder %s24, 1
      %s391 = scalar_select %p390, %s24, 1
      %p392 = scmp.lt.s32.totalorder %s389, 7
      %s393 = scalar_select %p392, %s389, 7
      %s394 = smul.addr %s391, 8
      %s395 = sadd.s32 %s393, %s394
      %s396 = smul.addr %s395, 4
      %s397 = scalar_lea.vmem %s3, %s396
      %p398 = pneg %p137
      %p399 = pneg %p134
      %p400 = scmp.lt.s32.totalorder %s24, 1
      %s401 = scalar_select %p400, %s24, 1
      %p402 = scmp.lt.s32.totalorder %s25, 0
      %s403 = scalar_select %p402, %s25, 0
      %s404 = sadd.s32 %s403, %s401
      %s405 = smul.addr %s404, 8
      %s406 = scalar_lea.vmem %s4, %s405
      %p407 = pneg %p165
      %p408 = pneg %p162
      %p409 = pneg %p186
      %p410 = pneg %p183
      %p411 = pneg %p207
      %p412 = pneg %p204
      %p413 = pneg %p228
      %p414 = pneg %p225
      %p415 = pneg %p249
      %p416 = pneg %p246
      %p417 = pneg %p277
      %p418 = pneg %p274
      %p419 = scmp.lt.s32.totalorder %s24, 1
      %s420 = scalar_select %p419, %s24, 1
      %p421 = scmp.lt.s32.totalorder %s25, 0
      %s422 = scalar_select %p421, %s25, 0
      %s423 = sadd.s32 %s422, %s420
      %s424 = smul.addr %s423, 8
      %s425 = scalar_lea.vmem %s9, %s424
      %p426 = scmp.lt.s32.totalorder %s24, 1
      %s427 = scalar_select %p426, %s24, 1
      %p428 = scmp.lt.s32.totalorder %s25, 0
      %s429 = scalar_select %p428, %s25, 0
      %s430 = sadd.s32 %s429, %s427
      %s431 = smul.addr %s430, 8
      %s432 = scalar_lea.vmem %s0, %s431
      %p433 = scmp.lt.s32.totalorder %s24, 1
      %s434 = scalar_select %p433, %s24, 1
      %s435 = smul.addr %s434, 8
      %s436 = scalar_lea.vmem %s1, %s435
      %p437 = scmp.lt.s32.totalorder %s24, 1
      %s438 = scalar_select %p437, %s24, 1
      %p439 = scmp.lt.s32.totalorder %s25, 0
      %s440 = scalar_select %p439, %s25, 0
      %s441 = sadd.s32 %s440, %s438
      %s442 = smul.addr %s441, 8
      %s443 = scalar_lea.vmem %s2, %s442
      %s444 = smul.u32 8, %s25
      %p445 = scmp.lt.s32.totalorder %s24, 1
      %s446 = scalar_select %p445, %s24, 1
      %p447 = scmp.lt.s32.totalorder %s444, 7
      %s448 = scalar_select %p447, %s444, 7
      %s449 = smul.addr %s446, 8
      %s450 = sadd.s32 %s448, %s449
      %s451 = smul.addr %s450, 4
      %s452 = scalar_lea.vmem %s3, %s451
      %s453 = smul.u32 8, %s25
      %p454 = scmp.lt.s32.totalorder %s24, 1
      %s455 = scalar_select %p454, %s24, 1
      %p456 = scmp.lt.s32.totalorder %s25, 0
      %s457 = scalar_select %p456, %s25, 0
      %s458 = sadd.s32 %s457, %s455
      %s459 = smul.addr %s458, 8
      %s460 = scalar_lea.vmem %s4, %s459
      %p461 = scmp.lt.s32.totalorder %s24, 1
      %s462 = scalar_select %p461, %s24, 1
      %p463 = scmp.lt.s32.totalorder %s25, 0
      %s464 = scalar_select %p463, %s25, 0
      %s465 = sadd.s32 %s464, %s462
      %s466 = smul.addr %s465, 8
      %s467 = scalar_lea.vmem %s9, %s466
      %v469 = vld [vmem:[%s432] sm:$0xff]
      %v470 = vld [vmem:[%s436] sm:$0xff]
      %v471 = vld [vmem:[%s443] sm:$0xff]
      %v472 = vld [vmem:[%s460] sm:$0xff]
      %v473 = vld [vmem:[%s452] sm:$0xf]
      %v474 = vld [vmem:[%s452 + $0x4] sm:$0xf]
      %v475 = vld [vmem:[%s452 + $0x8] sm:$0xf]
      %v476 = vld [vmem:[%s452 + $0xc] sm:$0xf]
      %v477 = vld [vmem:[%s452 + $0x10] sm:$0xf]
      %v478 = vld [vmem:[%s452 + $0x14] sm:$0xf]
      %v479 = vld [vmem:[%s452 + $0x18] sm:$0xf]
      %v480 = vld [vmem:[%s452 + $0x1c] sm:$0xf]
      %v481 = vld [vmem:[%s5] sm:$0x3]
      %v490 = vunpack.c.l.b16 %v473
      %v491 = vunpack.c.l.b16 %v474
      %v492 = vunpack.c.l.b16 %v475
      %v493 = vunpack.c.l.b16 %v476
      %v494 = vunpack.c.l.b16 %v477
      %v495 = vunpack.c.l.b16 %v478
      %v496 = vunpack.c.l.b16 %v479
      %v497 = vunpack.c.l.b16 %v480
      %v498 = vpack.c.b16 %v491, %v490
      %v499 = vpack.c.b16 %v493, %v492
      %v500 = vpack.c.b16 %v495, %v494
      %v501 = vpack.c.b16 %v497, %v496
      %vm502 = vcmask 31744
      %v504 = vsel %vm502, %v498, 0
      %v507 = vsel %vm502, %v499, 0
      %v510 = vsel %vm502, %v500, 0
      %v513 = vsel %vm502, %v501, 0
      %vm515 = vcmask 1041408
      %v517 = vsel %vm515, %v481, 0
      %519 = vmatprep.subr.bf16.mxu0 0
      %520 = vmatpush1.bf16.msra.mxu0 0
      %521 = vmatprep.subr.bf16.mxu0 0
      %522 = vmatpush1.bf16.msra.mxu0 0
      %523 = vmatprep.subr.bf16.mxu0 0
      %524 = vmatpush1.bf16.msra.mxu0 0
      %525 = vmatprep.subr.bf16.mxu0 0
      %526 = vmatpush1.bf16.msra.mxu0 0
      %527 = vmatprep.subr.bf16.mxu0 0
      %528 = vmatpush1.bf16.msra.mxu0 0
      %529 = vmatprep.subr.bf16.mxu0 0
      %530 = vmatpush1.bf16.msra.mxu0 0
      %531 = vmatprep.subr.bf16.mxu0 0
      %532 = vmatpush1.bf16.msra.mxu0 0
      %533 = vmatprep.subr.bf16.mxu0 0
      %534 = vmatpush1.bf16.msra.mxu0 %v517
      %535 = vmatprep.subr.bf16.mxu0 0
      %536 = vmatpush2.bf16.msra.mxu0 0
      %537 = vmatprep.subr.bf16.mxu0 0
      %538 = vmatpush2.bf16.msra.mxu0 0
      %539 = vmatprep.subr.bf16.mxu0 0
      %540 = vmatpush2.bf16.msra.mxu0 0
      %541 = vmatprep.subr.bf16.mxu0 0
      %542 = vmatpush2.bf16.msra.mxu0 0
      %543 = vmatprep.subr.bf16.mxu0 0
      %544 = vmatpush2.bf16.msra.mxu0 0
      %545 = vmatprep.subr.bf16.mxu0 0
      %546 = vmatpush2.bf16.msra.mxu0 0
      %547 = vmatprep.subr.bf16.mxu0 0
      %548 = vmatpush2.bf16.msra.mxu0 0
      %549 = vmatprep.subr.bf16.mxu0 0
      %550 = vmatpush2.bf16.msra.mxu0 0
      %551 = vmatprep.mubr.bf16.mxu0 0
      %552 = vmatmul.mubr.bf16.gmra.mxu0 %v504
      %v553 = vpop.f32.mrf.mxu0
      %v554 = vadd.f32 0.0, %v553
      %v555 = vpop.f32.mrf.mxu0
      %v556 = vpop.f32.mrf.mxu0
      %v557 = vadd.f32 0.0, %v556
      %v558 = vpop.f32.mrf.mxu0
      %559 = vmatprep.mubr.bf16.mxu0 0
      %560 = vmatmul.mubr.bf16.gmra.mxu0 %v507
      %v561 = vpop.f32.mrf.mxu0
      %v562 = vadd.f32 0.0, %v561
      %v563 = vpop.f32.mrf.mxu0
      %v564 = vpop.f32.mrf.mxu0
      %v565 = vadd.f32 0.0, %v564
      %v566 = vpop.f32.mrf.mxu0
      %567 = vmatprep.mubr.bf16.mxu0 0
      %568 = vmatmul.mubr.bf16.gmra.mxu0 %v510
      %v569 = vpop.f32.mrf.mxu0
      %v570 = vadd.f32 0.0, %v569
      %v571 = vpop.f32.mrf.mxu0
      %v572 = vpop.f32.mrf.mxu0
      %v573 = vadd.f32 0.0, %v572
      %v574 = vpop.f32.mrf.mxu0
      %575 = vmatprep.mubr.bf16.mxu0 0
      %576 = vmatmul.mubr.bf16.gmra.mxu0 %v513
      %v577 = vpop.f32.mrf.mxu0
      %v578 = vadd.f32 0.0, %v577
      %v579 = vpop.f32.mrf.mxu0
      %v580 = vpop.f32.mrf.mxu0
      %v581 = vadd.f32 0.0, %v580
      %v582 = vpop.f32.mrf.mxu0
      %583 = vdwg.mxu0
      %v584 = vadd.f32 %v554, %v470
      %v585 = vadd.f32 %v557, %v470
      %v586 = vadd.f32 %v562, %v470
      %v587 = vadd.f32 %v565, %v470
      %v588 = vadd.f32 %v570, %v470
      %v589 = vadd.f32 %v573, %v470
      %v590 = vadd.f32 %v578, %v470
      %v591 = vadd.f32 %v581, %v470
      %v593 = vcombine.high %v471, %v471
      %v595 = vunpack.c.l.s4 1966171168
      %v596 = vunpack.c.0.s8 %v595
      %v597 = vlaneseq
      %v598 = vshrl.u32 %v597, 7
      %v599 = vsub.s32 %v596, %v598
      %v600 = vrot.slane %v471, %v599
      %v602 = vunpack.c.l.s4 1966171168
      %v603 = vunpack.c.0.s8 %v602
      %v604 = vlaneseq
      %v605 = vshrl.u32 %v604, 7
      %v606 = vsub.s32 %v603, %v605
      %v607 = vrot.slane %v593, %v606
      %v608 = vcombine.high %v600, %v600
      %v609 = vcombine.high %v607, %v607
      %v611 = vunpack.c.l.s4 1966171168
      %v612 = vunpack.c.0.s8 %v611
      %v613 = vlaneseq
      %v614 = vshrl.u32 %v613, 7
      %v615 = vsub.s32 %v612, %v614
      %v616 = vrot.slane %v600, %v615
      %v618 = vunpack.c.l.s4 1966171168
      %v619 = vunpack.c.0.s8 %v618
      %v620 = vlaneseq
      %v621 = vshrl.u32 %v620, 7
      %v622 = vsub.s32 %v619, %v621
      %v623 = vrot.slane %v607, %v622
      %v625 = vunpack.c.l.s4 1966171168
      %v626 = vunpack.c.0.s8 %v625
      %v627 = vlaneseq
      %v628 = vshrl.u32 %v627, 7
      %v629 = vsub.s32 %v626, %v628
      %v630 = vrot.slane %v608, %v629
      %v632 = vunpack.c.l.s4 1966171168
      %v633 = vunpack.c.0.s8 %v632
      %v634 = vlaneseq
      %v635 = vshrl.u32 %v634, 7
      %v636 = vsub.s32 %v633, %v635
      %v637 = vrot.slane %v609, %v636
      %v638 = vcombine.high %v616, %v616
      %v639 = vcombine.high %v623, %v623
      %v640 = vcombine.high %v630, %v630
      %v641 = vcombine.high %v637, %v637
      %v642 = vlaneseq
      %v643 = vshrl.u32 %v642, 7
      %v644 = vsub.s32 0, %v643
      %v645 = vrot.slane %v616, %v644
      %v646 = vlaneseq
      %v647 = vshrl.u32 %v646, 7
      %v648 = vsub.s32 0, %v647
      %v649 = vrot.slane %v630, %v648
      %v650 = vlaneseq
      %v651 = vshrl.u32 %v650, 7
      %v652 = vsub.s32 0, %v651
      %v653 = vrot.slane %v638, %v652
      %v654 = vlaneseq
      %v655 = vshrl.u32 %v654, 7
      %v656 = vsub.s32 0, %v655
      %v657 = vrot.slane %v640, %v656
      %v658 = vlaneseq
      %v659 = vshrl.u32 %v658, 7
      %v660 = vsub.s32 0, %v659
      %v661 = vrot.slane %v623, %v660
      %v662 = vlaneseq
      %v663 = vshrl.u32 %v662, 7
      %v664 = vsub.s32 0, %v663
      %v665 = vrot.slane %v637, %v664
      %v666 = vlaneseq
      %v667 = vshrl.u32 %v666, 7
      %v668 = vsub.s32 0, %v667
      %v669 = vrot.slane %v639, %v668
      %v670 = vlaneseq
      %v671 = vshrl.u32 %v670, 7
      %v672 = vsub.s32 0, %v671
      %v673 = vrot.slane %v641, %v672
      %v682 = vadd.f32 %v584, %v645
      %v683 = vadd.f32 %v585, %v649
      %v684 = vadd.f32 %v586, %v653
      %v685 = vadd.f32 %v587, %v657
      %v686 = vadd.f32 %v588, %v661
      %v687 = vadd.f32 %v589, %v665
      %v688 = vadd.f32 %v590, %v669
      %v689 = vadd.f32 %v591, %v673
      %v690 = vlaneseq
      %v691 = vshrl.u32 %v690, 7
      %v692 = vsub.s32 0, %v691
      %v693 = vrot.slane %v472, %v692
      %695 = vbcast.lane.b32.xlu0 %v693, 256
      %v696 = vpop.permute.xlu0 %695
      %v697 = vlaneseq
      %v698 = vshrl.u32 %v697, 7
      %v699 = vsub.s32 1, %v698
      %v700 = vrot.slane %v472, %v699
      %702 = vbcast.lane.b32.xlu0 %v700, 256
      %v703 = vpop.permute.xlu0 %702
      %v704 = vlaneseq
      %v705 = vshrl.u32 %v704, 7
      %v706 = vsub.s32 2, %v705
      %v707 = vrot.slane %v472, %v706
      %709 = vbcast.lane.b32.xlu0 %v707, 256
      %v710 = vpop.permute.xlu0 %709
      %v711 = vlaneseq
      %v712 = vshrl.u32 %v711, 7
      %v713 = vsub.s32 3, %v712
      %v714 = vrot.slane %v472, %v713
      %716 = vbcast.lane.b32.xlu0 %v714, 256
      %v717 = vpop.permute.xlu0 %716
      %v718 = vlaneseq
      %v719 = vshrl.u32 %v718, 7
      %v720 = vsub.s32 4, %v719
      %v721 = vrot.slane %v472, %v720
      %723 = vbcast.lane.b32.xlu0 %v721, 256
      %v724 = vpop.permute.xlu0 %723
      %v725 = vlaneseq
      %v726 = vshrl.u32 %v725, 7
      %v727 = vsub.s32 5, %v726
      %v728 = vrot.slane %v472, %v727
      %730 = vbcast.lane.b32.xlu0 %v728, 256
      %v731 = vpop.permute.xlu0 %730
      %v732 = vlaneseq
      %v733 = vshrl.u32 %v732, 7
      %v734 = vsub.s32 6, %v733
      %v735 = vrot.slane %v472, %v734
      %737 = vbcast.lane.b32.xlu0 %v735, 256
      %v738 = vpop.permute.xlu0 %737
      %v739 = vlaneseq
      %v740 = vshrl.u32 %v739, 7
      %v741 = vsub.s32 7, %v740
      %v742 = vrot.slane %v472, %v741
      %744 = vbcast.lane.b32.xlu0 %v742, 256
      %v745 = vpop.permute.xlu0 %744
      %vm746 = vcmp.ne.f32.partialorder %v696, 0.0
      %vm747 = vcmp.ne.f32.partialorder %v703, 0.0
      %vm748 = vcmp.ne.f32.partialorder %v710, 0.0
      %vm749 = vcmp.ne.f32.partialorder %v717, 0.0
      %vm750 = vcmp.ne.f32.partialorder %v724, 0.0
      %vm751 = vcmp.ne.f32.partialorder %v731, 0.0
      %vm752 = vcmp.ne.f32.partialorder %v738, 0.0
      %vm753 = vcmp.ne.f32.partialorder %v745, 0.0
      %vm754 = vcmask 64512
      %v755 = vsel %vm754, %v472, 0.0
      %756 = vadd.xlane.f32.xlu0 %v755
      %v757 = vpop.xlane.xlu0 %756
      %vm758 = vcmp.gt.f32.partialorder %v757, 0.0
      %v759 = vmax.f32 %v757, 1.0
      %v760 = vrcp.pop %v759
      %v761 = vmul.f32 1.0, %v760
      %v762 = vsel %vm746, 1, 0
      %v763 = vsel %vm747, 1, 0
      %v764 = vsel %vm748, 1, 0
      %v765 = vsel %vm749, 1, 0
      %v766 = vsel %vm750, 1, 0
      %v767 = vsel %vm751, 1, 0
      %v768 = vsel %vm752, 1, 0
      %v769 = vsel %vm753, 1, 0
      %vm770 = vcmp.eq.s32.totalorder %v762, 1
      %vm771 = vcmp.eq.s32.totalorder %v763, 1
      %vm772 = vcmp.eq.s32.totalorder %v764, 1
      %vm773 = vcmp.eq.s32.totalorder %v765, 1
      %vm774 = vcmp.eq.s32.totalorder %v766, 1
      %vm775 = vcmp.eq.s32.totalorder %v767, 1
      %vm776 = vcmp.eq.s32.totalorder %v768, 1
      %vm777 = vcmp.eq.s32.totalorder %v769, 1
      %v778 = vsel %vm770, %v682, -1e+30
      %v779 = vsel %vm771, %v683, -1e+30
      %v780 = vsel %vm772, %v684, -1e+30
      %v781 = vsel %vm773, %v685, -1e+30
      %v782 = vsel %vm774, %v686, -1e+30
      %v783 = vsel %vm775, %v687, -1e+30
      %v784 = vsel %vm776, %v688, -1e+30
      %v785 = vsel %vm777, %v689, -1e+30
      %vm786 = vcmask 261120
      %v787 = vsel %vm786, %v778, -inf
      %v788 = vrot.slane %v787, 4
      %v789 = vmax.f32 %v787, %v788
      %v790 = vrot.slane %v789, 2
      %v791 = vmax.f32 %v789, %v790
      %v792 = vrot.slane %v791, 1
      %v793 = vmax.f32 %v791, %v792
      %v794 = vsel %vm786, %v779, -inf
      %v795 = vrot.slane %v794, 4
      %v796 = vmax.f32 %v794, %v795
      %v797 = vrot.slane %v796, 2
      %v798 = vmax.f32 %v796, %v797
      %v799 = vrot.slane %v798, 1
      %v800 = vmax.f32 %v798, %v799
      %v801 = vsel %vm786, %v780, -inf
      %v802 = vrot.slane %v801, 4
      %v803 = vmax.f32 %v801, %v802
      %v804 = vrot.slane %v803, 2
      %v805 = vmax.f32 %v803, %v804
      %v806 = vrot.slane %v805, 1
      %v807 = vmax.f32 %v805, %v806
      %v808 = vsel %vm786, %v781, -inf
      %v809 = vrot.slane %v808, 4
      %v810 = vmax.f32 %v808, %v809
      %v811 = vrot.slane %v810, 2
      %v812 = vmax.f32 %v810, %v811
      %v813 = vrot.slane %v812, 1
      %v814 = vmax.f32 %v812, %v813
      %v815 = vsel %vm786, %v782, -inf
      %v816 = vrot.slane %v815, 4
      %v817 = vmax.f32 %v815, %v816
      %v818 = vrot.slane %v817, 2
      %v819 = vmax.f32 %v817, %v818
      %v820 = vrot.slane %v819, 1
      %v821 = vmax.f32 %v819, %v820
      %v822 = vsel %vm786, %v783, -inf
      %v823 = vrot.slane %v822, 4
      %v824 = vmax.f32 %v822, %v823
      %v825 = vrot.slane %v824, 2
      %v826 = vmax.f32 %v824, %v825
      %v827 = vrot.slane %v826, 1
      %v828 = vmax.f32 %v826, %v827
      %v829 = vsel %vm786, %v784, -inf
      %v830 = vrot.slane %v829, 4
      %v831 = vmax.f32 %v829, %v830
      %v832 = vrot.slane %v831, 2
      %v833 = vmax.f32 %v831, %v832
      %v834 = vrot.slane %v833, 1
      %v835 = vmax.f32 %v833, %v834
      %v836 = vsel %vm786, %v785, -inf
      %v837 = vrot.slane %v836, 4
      %v838 = vmax.f32 %v836, %v837
      %v839 = vrot.slane %v838, 2
      %v840 = vmax.f32 %v838, %v839
      %v841 = vrot.slane %v840, 1
      %v842 = vmax.f32 %v840, %v841
      %v843 = vsel %vm770, %v682, 1e+30
      %v844 = vsel %vm771, %v683, 1e+30
      %v845 = vsel %vm772, %v684, 1e+30
      %v846 = vsel %vm773, %v685, 1e+30
      %v847 = vsel %vm774, %v686, 1e+30
      %v848 = vsel %vm775, %v687, 1e+30
      %v849 = vsel %vm776, %v688, 1e+30
      %v850 = vsel %vm777, %v689, 1e+30
      %v851 = vsel %vm786, %v843, inf
      %v852 = vrot.slane %v851, 4
      %v853 = vmin.f32 %v851, %v852
      %v854 = vrot.slane %v853, 2
      %v855 = vmin.f32 %v853, %v854
      %v856 = vrot.slane %v855, 1
      %v857 = vmin.f32 %v855, %v856
      %v858 = vsel %vm786, %v844, inf
      %v859 = vrot.slane %v858, 4
      %v860 = vmin.f32 %v858, %v859
      %v861 = vrot.slane %v860, 2
      %v862 = vmin.f32 %v860, %v861
      %v863 = vrot.slane %v862, 1
      %v864 = vmin.f32 %v862, %v863
      %v865 = vsel %vm786, %v845, inf
      %v866 = vrot.slane %v865, 4
      %v867 = vmin.f32 %v865, %v866
      %v868 = vrot.slane %v867, 2
      %v869 = vmin.f32 %v867, %v868
      %v870 = vrot.slane %v869, 1
      %v871 = vmin.f32 %v869, %v870
      %v872 = vsel %vm786, %v846, inf
      %v873 = vrot.slane %v872, 4
      %v874 = vmin.f32 %v872, %v873
      %v875 = vrot.slane %v874, 2
      %v876 = vmin.f32 %v874, %v875
      %v877 = vrot.slane %v876, 1
      %v878 = vmin.f32 %v876, %v877
      %v879 = vsel %vm786, %v847, inf
      %v880 = vrot.slane %v879, 4
      %v881 = vmin.f32 %v879, %v880
      %v882 = vrot.slane %v881, 2
      %v883 = vmin.f32 %v881, %v882
      %v884 = vrot.slane %v883, 1
      %v885 = vmin.f32 %v883, %v884
      %v886 = vsel %vm786, %v848, inf
      %v887 = vrot.slane %v886, 4
      %v888 = vmin.f32 %v886, %v887
      %v889 = vrot.slane %v888, 2
      %v890 = vmin.f32 %v888, %v889
      %v891 = vrot.slane %v890, 1
      %v892 = vmin.f32 %v890, %v891
      %v893 = vsel %vm786, %v849, inf
      %v894 = vrot.slane %v893, 4
      %v895 = vmin.f32 %v893, %v894
      %v896 = vrot.slane %v895, 2
      %v897 = vmin.f32 %v895, %v896
      %v898 = vrot.slane %v897, 1
      %v899 = vmin.f32 %v897, %v898
      %v900 = vsel %vm786, %v850, inf
      %v901 = vrot.slane %v900, 4
      %v902 = vmin.f32 %v900, %v901
      %v903 = vrot.slane %v902, 2
      %v904 = vmin.f32 %v902, %v903
      %v905 = vrot.slane %v904, 1
      %v906 = vmin.f32 %v904, %v905
      %v907 = vsel %vm758, 1, 0
      %vm908 = vcmp.eq.s32.totalorder %v907, 1
      %vm917 = vcmask 1041409
      %v918 = vsel %vm917, %v800, %v793
      %vm919 = vcmask 1042434
      %v920 = vsel %vm919, %v807, %v918
      %vm921 = vcmask 1043459
      %v922 = vsel %vm921, %v814, %v920
      %vm923 = vcmask 1044484
      %v924 = vsel %vm923, %v821, %v922
      %vm925 = vcmask 1045509
      %v926 = vsel %vm925, %v828, %v924
      %vm927 = vcmask 1046534
      %v928 = vsel %vm927, %v835, %v926
      %vm929 = vcmask 1047559
      %v930 = vsel %vm929, %v842, %v928
      %v932 = vsel %vm908, %v930, 0.0
      %v941 = vsel %vm917, %v864, %v857
      %v942 = vsel %vm919, %v871, %v941
      %v943 = vsel %vm921, %v878, %v942
      %v944 = vsel %vm923, %v885, %v943
      %v945 = vsel %vm925, %v892, %v944
      %v946 = vsel %vm927, %v899, %v945
      %v947 = vsel %vm929, %v906, %v946
      %v949 = vsel %vm908, %v947, 0.0
      %v950 = vsel %vm770, %v682, 0.0
      %v951 = vsel %vm771, %v683, 0.0
      %v952 = vsel %vm772, %v684, 0.0
      %v953 = vsel %vm773, %v685, 0.0
      %v954 = vsel %vm774, %v686, 0.0
      %v955 = vsel %vm775, %v687, 0.0
      %v956 = vsel %vm776, %v688, 0.0
      %v957 = vsel %vm777, %v689, 0.0
      %v958 = vsel %vm786, %v950, 0.0
      %v959 = vrot.slane %v958, 4
      %v960 = vadd.f32 %v958, %v959
      %v961 = vrot.slane %v960, 2
      %v962 = vadd.f32 %v960, %v961
      %v963 = vrot.slane %v962, 1
      %v964 = vadd.f32 %v962, %v963
      %v965 = vsel %vm786, %v951, 0.0
      %v966 = vrot.slane %v965, 4
      %v967 = vadd.f32 %v965, %v966
      %v968 = vrot.slane %v967, 2
      %v969 = vadd.f32 %v967, %v968
      %v970 = vrot.slane %v969, 1
      %v971 = vadd.f32 %v969, %v970
      %v972 = vsel %vm786, %v952, 0.0
      %v973 = vrot.slane %v972, 4
      %v974 = vadd.f32 %v972, %v973
      %v975 = vrot.slane %v974, 2
      %v976 = vadd.f32 %v974, %v975
      %v977 = vrot.slane %v976, 1
      %v978 = vadd.f32 %v976, %v977
      %v979 = vsel %vm786, %v953, 0.0
      %v980 = vrot.slane %v979, 4
      %v981 = vadd.f32 %v979, %v980
      %v982 = vrot.slane %v981, 2
      %v983 = vadd.f32 %v981, %v982
      %v984 = vrot.slane %v983, 1
      %v985 = vadd.f32 %v983, %v984
      %v986 = vsel %vm786, %v954, 0.0
      %v987 = vrot.slane %v986, 4
      %v988 = vadd.f32 %v986, %v987
      %v989 = vrot.slane %v988, 2
      %v990 = vadd.f32 %v988, %v989
      %v991 = vrot.slane %v990, 1
      %v992 = vadd.f32 %v990, %v991
      %v993 = vsel %vm786, %v955, 0.0
      %v994 = vrot.slane %v993, 4
      %v995 = vadd.f32 %v993, %v994
      %v996 = vrot.slane %v995, 2
      %v997 = vadd.f32 %v995, %v996
      %v998 = vrot.slane %v997, 1
      %v999 = vadd.f32 %v997, %v998
      %v1000 = vsel %vm786, %v956, 0.0
      %v1001 = vrot.slane %v1000, 4
      %v1002 = vadd.f32 %v1000, %v1001
      %v1003 = vrot.slane %v1002, 2
      %v1004 = vadd.f32 %v1002, %v1003
      %v1005 = vrot.slane %v1004, 1
      %v1006 = vadd.f32 %v1004, %v1005
      %v1007 = vsel %vm786, %v957, 0.0
      %v1008 = vrot.slane %v1007, 4
      %v1009 = vadd.f32 %v1007, %v1008
      %v1010 = vrot.slane %v1009, 2
      %v1011 = vadd.f32 %v1009, %v1010
      %v1012 = vrot.slane %v1011, 1
      %v1013 = vadd.f32 %v1011, %v1012
      %v1015 = vrot.slane %v761, 1
      %v1016 = vrot.slane %v761, 2
      %v1017 = vrot.slane %v761, 3
      %v1018 = vrot.slane %v761, 4
      %v1019 = vrot.slane %v761, 5
      %v1020 = vrot.slane %v761, 6
      %v1021 = vrot.slane %v761, 7
      %v1030 = vmul.f32 %v964, %v761
      %v1031 = vmul.f32 %v971, %v1015
      %v1032 = vmul.f32 %v978, %v1016
      %v1033 = vmul.f32 %v985, %v1017
      %v1034 = vmul.f32 %v992, %v1018
      %v1035 = vmul.f32 %v999, %v1019
      %v1036 = vmul.f32 %v1006, %v1020
      %v1037 = vmul.f32 %v1013, %v1021
      %v1038 = vmul.f32 %v950, %v950
      %v1039 = vmul.f32 %v951, %v951
      %v1040 = vmul.f32 %v952, %v952
      %v1041 = vmul.f32 %v953, %v953
      %v1042 = vmul.f32 %v954, %v954
      %v1043 = vmul.f32 %v955, %v955
      %v1044 = vmul.f32 %v956, %v956
      %v1045 = vmul.f32 %v957, %v957
      %v1046 = vsel %vm786, %v1038, 0.0
      %v1047 = vrot.slane %v1046, 4
      %v1048 = vadd.f32 %v1046, %v1047
      %v1049 = vrot.slane %v1048, 2
      %v1050 = vadd.f32 %v1048, %v1049
      %v1051 = vrot.slane %v1050, 1
      %v1052 = vadd.f32 %v1050, %v1051
      %v1053 = vsel %vm786, %v1039, 0.0
      %v1054 = vrot.slane %v1053, 4
      %v1055 = vadd.f32 %v1053, %v1054
      %v1056 = vrot.slane %v1055, 2
      %v1057 = vadd.f32 %v1055, %v1056
      %v1058 = vrot.slane %v1057, 1
      %v1059 = vadd.f32 %v1057, %v1058
      %v1060 = vsel %vm786, %v1040, 0.0
      %v1061 = vrot.slane %v1060, 4
      %v1062 = vadd.f32 %v1060, %v1061
      %v1063 = vrot.slane %v1062, 2
      %v1064 = vadd.f32 %v1062, %v1063
      %v1065 = vrot.slane %v1064, 1
      %v1066 = vadd.f32 %v1064, %v1065
      %v1067 = vsel %vm786, %v1041, 0.0
      %v1068 = vrot.slane %v1067, 4
      %v1069 = vadd.f32 %v1067, %v1068
      %v1070 = vrot.slane %v1069, 2
      %v1071 = vadd.f32 %v1069, %v1070
      %v1072 = vrot.slane %v1071, 1
      %v1073 = vadd.f32 %v1071, %v1072
      %v1074 = vsel %vm786, %v1042, 0.0
      %v1075 = vrot.slane %v1074, 4
      %v1076 = vadd.f32 %v1074, %v1075
      %v1077 = vrot.slane %v1076, 2
      %v1078 = vadd.f32 %v1076, %v1077
      %v1079 = vrot.slane %v1078, 1
      %v1080 = vadd.f32 %v1078, %v1079
      %v1081 = vsel %vm786, %v1043, 0.0
      %v1082 = vrot.slane %v1081, 4
      %v1083 = vadd.f32 %v1081, %v1082
      %v1084 = vrot.slane %v1083, 2
      %v1085 = vadd.f32 %v1083, %v1084
      %v1086 = vrot.slane %v1085, 1
      %v1087 = vadd.f32 %v1085, %v1086
      %v1088 = vsel %vm786, %v1044, 0.0
      %v1089 = vrot.slane %v1088, 4
      %v1090 = vadd.f32 %v1088, %v1089
      %v1091 = vrot.slane %v1090, 2
      %v1092 = vadd.f32 %v1090, %v1091
      %v1093 = vrot.slane %v1092, 1
      %v1094 = vadd.f32 %v1092, %v1093
      %v1095 = vsel %vm786, %v1045, 0.0
      %v1096 = vrot.slane %v1095, 4
      %v1097 = vadd.f32 %v1095, %v1096
      %v1098 = vrot.slane %v1097, 2
      %v1099 = vadd.f32 %v1097, %v1098
      %v1100 = vrot.slane %v1099, 1
      %v1101 = vadd.f32 %v1099, %v1100
      %v1102 = vmul.f32 %v1052, %v761
      %v1103 = vmul.f32 %v1059, %v1015
      %v1104 = vmul.f32 %v1066, %v1016
      %v1105 = vmul.f32 %v1073, %v1017
      %v1106 = vmul.f32 %v1080, %v1018
      %v1107 = vmul.f32 %v1087, %v1019
      %v1108 = vmul.f32 %v1094, %v1020
      %v1109 = vmul.f32 %v1101, %v1021
      %v1110 = vmul.f32 %v1030, %v1030
      %v1111 = vmul.f32 %v1031, %v1031
      %v1112 = vmul.f32 %v1032, %v1032
      %v1113 = vmul.f32 %v1033, %v1033
      %v1114 = vmul.f32 %v1034, %v1034
      %v1115 = vmul.f32 %v1035, %v1035
      %v1116 = vmul.f32 %v1036, %v1036
      %v1117 = vmul.f32 %v1037, %v1037
      %v1118 = vsub.f32 %v1102, %v1110
      %v1119 = vsub.f32 %v1103, %v1111
      %v1120 = vsub.f32 %v1104, %v1112
      %v1121 = vsub.f32 %v1105, %v1113
      %v1122 = vsub.f32 %v1106, %v1114
      %v1123 = vsub.f32 %v1107, %v1115
      %v1124 = vsub.f32 %v1108, %v1116
      %v1125 = vsub.f32 %v1109, %v1117
      %v1126 = vmax.f32 %v1118, 0.0
      %v1127 = vmax.f32 %v1119, 0.0
      %v1128 = vmax.f32 %v1120, 0.0
      %v1129 = vmax.f32 %v1121, 0.0
      %v1130 = vmax.f32 %v1122, 0.0
      %v1131 = vmax.f32 %v1123, 0.0
      %v1132 = vmax.f32 %v1124, 0.0
      %v1133 = vmax.f32 %v1125, 0.0
      %v1134 = vadd.f32 %v1126, 1e-05
      %v1135 = vadd.f32 %v1127, 1e-05
      %v1136 = vadd.f32 %v1128, 1e-05
      %v1137 = vadd.f32 %v1129, 1e-05
      %v1138 = vadd.f32 %v1130, 1e-05
      %v1139 = vadd.f32 %v1131, 1e-05
      %v1140 = vadd.f32 %v1132, 1e-05
      %v1141 = vadd.f32 %v1133, 1e-05
      %v1142 = vrsqrt.pop %v1134
      %v1143 = vmul.f32 %v1134, %v1142
      %vm1144 = vcmp.eq.f32.partialorder %v1134, inf
      %v1145 = vsel %vm1144, %v1134, %v1143
      %vm1146 = vcmp.eq.f32.partialorder %v1134, 0.0
      %v1147 = vand.u32 %v1134, 2147483648
      %v1148 = vsel %vm1146, %v1147, %v1145
      %v1149 = vrsqrt.pop %v1135
      %v1150 = vmul.f32 %v1135, %v1149
      %vm1151 = vcmp.eq.f32.partialorder %v1135, inf
      %v1152 = vsel %vm1151, %v1135, %v1150
      %vm1153 = vcmp.eq.f32.partialorder %v1135, 0.0
      %v1154 = vand.u32 %v1135, 2147483648
      %v1155 = vsel %vm1153, %v1154, %v1152
      %v1156 = vrsqrt.pop %v1136
      %v1157 = vmul.f32 %v1136, %v1156
      %vm1158 = vcmp.eq.f32.partialorder %v1136, inf
      %v1159 = vsel %vm1158, %v1136, %v1157
      %vm1160 = vcmp.eq.f32.partialorder %v1136, 0.0
      %v1161 = vand.u32 %v1136, 2147483648
      %v1162 = vsel %vm1160, %v1161, %v1159
      %v1163 = vrsqrt.pop %v1137
      %v1164 = vmul.f32 %v1137, %v1163
      %vm1165 = vcmp.eq.f32.partialorder %v1137, inf
      %v1166 = vsel %vm1165, %v1137, %v1164
      %vm1167 = vcmp.eq.f32.partialorder %v1137, 0.0
      %v1168 = vand.u32 %v1137, 2147483648
      %v1169 = vsel %vm1167, %v1168, %v1166
      %v1170 = vrsqrt.pop %v1138
      %v1171 = vmul.f32 %v1138, %v1170
      %vm1172 = vcmp.eq.f32.partialorder %v1138, inf
      %v1173 = vsel %vm1172, %v1138, %v1171
      %vm1174 = vcmp.eq.f32.partialorder %v1138, 0.0
      %v1175 = vand.u32 %v1138, 2147483648
      %v1176 = vsel %vm1174, %v1175, %v1173
      %v1177 = vrsqrt.pop %v1139
      %v1178 = vmul.f32 %v1139, %v1177
      %vm1179 = vcmp.eq.f32.partialorder %v1139, inf
      %v1180 = vsel %vm1179, %v1139, %v1178
      %vm1181 = vcmp.eq.f32.partialorder %v1139, 0.0
      %v1182 = vand.u32 %v1139, 2147483648
      %v1183 = vsel %vm1181, %v1182, %v1180
      %v1184 = vrsqrt.pop %v1140
      %v1185 = vmul.f32 %v1140, %v1184
      %vm1186 = vcmp.eq.f32.partialorder %v1140, inf
      %v1187 = vsel %vm1186, %v1140, %v1185
      %vm1188 = vcmp.eq.f32.partialorder %v1140, 0.0
      %v1189 = vand.u32 %v1140, 2147483648
      %v1190 = vsel %vm1188, %v1189, %v1187
      %v1191 = vrsqrt.pop %v1141
      %v1192 = vmul.f32 %v1141, %v1191
      %vm1193 = vcmp.eq.f32.partialorder %v1141, inf
      %v1194 = vsel %vm1193, %v1141, %v1192
      %vm1195 = vcmp.eq.f32.partialorder %v1141, 0.0
      %v1196 = vand.u32 %v1141, 2147483648
      %v1197 = vsel %vm1195, %v1196, %v1194
      %v1206 = vrot.slane %v1031, 7
      %v1207 = vsel %vm917, %v1206, %v1030
      %v1208 = vrot.slane %v1032, 6
      %v1209 = vsel %vm919, %v1208, %v1207
      %v1210 = vrot.slane %v1033, 5
      %v1211 = vsel %vm921, %v1210, %v1209
      %v1212 = vrot.slane %v1034, 4
      %v1213 = vsel %vm923, %v1212, %v1211
      %v1214 = vrot.slane %v1035, 3
      %v1215 = vsel %vm925, %v1214, %v1213
      %v1216 = vrot.slane %v1036, 2
      %v1217 = vsel %vm927, %v1216, %v1215
      %v1218 = vrot.slane %v1037, 1
      %v1219 = vsel %vm929, %v1218, %v1217
      %1222 = vrot.lane.b32.xlu0 %v932, 32
      %v1223 = vpop.permute.xlu0 %1222
      %1226 = vrot.lane.b32.xlu0 %v949, 64
      %v1227 = vpop.permute.xlu0 %1226
      %v1237 = vrot.slane %v1155, 7
      %v1238 = vsel %vm917, %v1237, %v1148
      %v1239 = vrot.slane %v1162, 6
      %v1240 = vsel %vm919, %v1239, %v1238
      %v1241 = vrot.slane %v1169, 5
      %v1242 = vsel %vm921, %v1241, %v1240
      %v1243 = vrot.slane %v1176, 4
      %v1244 = vsel %vm923, %v1243, %v1242
      %v1245 = vrot.slane %v1183, 3
      %v1246 = vsel %vm925, %v1245, %v1244
      %v1247 = vrot.slane %v1190, 2
      %v1248 = vsel %vm927, %v1247, %v1246
      %v1249 = vrot.slane %v1197, 1
      %v1250 = vsel %vm929, %v1249, %v1248
      %1251 = vrot.lane.b32.xlu0 %v1250, 96
      %v1252 = vpop.permute.xlu0 %1251
      %v1254 = vsel %vm786, %v1219, %v1223
      %vm1255 = vcmask 523264
      %v1256 = vsel %vm1255, %v1254, %v1227
      %vm1257 = vcmask 785408
      %v1258 = vsel %vm1257, %v1256, %v1252
      %v1259 = vadd.f32 %v757, 1.0
      %v1260 = vlog2.pop %v1259
      %v1261 = vmul.f32 %v1260, 0.6931472
      %v1262 = vmax.f32 %v1261, 1e-06
      %v1263 = vrcp.pop %v1262
      %v1264 = vmul.f32 %v1258, %v1261
      %v1265 = vmul.f32 %v1258, %v1263
      %v1266 = vpack.c.bf16 %v469, %v469
      %v1267 = vld [vmem:[%s6] sm:$0xf]
      %v1268 = vld [vmem:[%s6 + $0x4] sm:$0xf]
      %v1269 = vld [vmem:[%s6 + $0x8] sm:$0xf]
      %v1270 = vld [vmem:[%s6 + $0xc] sm:$0xf]
      %v1271 = vpack.c.bf16 %v1258, %v1258
      %v1272 = vpack.c.bf16 %v1264, %v1264
      %v1273 = vpack.c.bf16 %v1265, %v1265
      %v1274 = vld [vmem:[%s7] sm:$0xf]
      %v1275 = vld [vmem:[%s7 + $0x4] sm:$0xf]
      %v1276 = vld [vmem:[%s7 + $0x8] sm:$0xf]
      %v1277 = vld [vmem:[%s7 + $0xc] sm:$0xf]
      %v1278 = vld [vmem:[%s7 + $0x10] sm:$0xf]
      %v1279 = vld [vmem:[%s7 + $0x14] sm:$0xf]
      %v1280 = vld [vmem:[%s7 + $0x18] sm:$0xf]
      %v1281 = vld [vmem:[%s7 + $0x1c] sm:$0xf]
      %v1282 = vld [vmem:[%s7 + $0x20] sm:$0xf]
      %v1283 = vld [vmem:[%s7 + $0x24] sm:$0xf]
      %v1284 = vld [vmem:[%s7 + $0x28] sm:$0xf]
      %v1285 = vld [vmem:[%s7 + $0x2c] sm:$0xf]
      %v1286 = vld [vmem:[%s7 + $0x30] sm:$0xf]
      %v1287 = vld [vmem:[%s7 + $0x34] sm:$0xf]
      %v1288 = vld [vmem:[%s7 + $0x38] sm:$0xf]
      %v1289 = vld [vmem:[%s7 + $0x3c] sm:$0xf]
      %v1290 = vld [vmem:[%s7 + $0x40] sm:$0xf]
      %v1291 = vld [vmem:[%s7 + $0x44] sm:$0xf]
      %v1292 = vld [vmem:[%s7 + $0x48] sm:$0xf]
      %v1293 = vld [vmem:[%s7 + $0x4c] sm:$0xf]
      %v1294 = vld [vmem:[%s7 + $0x50] sm:$0xf]
      %v1295 = vld [vmem:[%s7 + $0x54] sm:$0xf]
      %v1296 = vld [vmem:[%s7 + $0x58] sm:$0xf]
      %v1297 = vld [vmem:[%s7 + $0x5c] sm:$0xf]
      %v1298 = vld [vmem:[%s7 + $0x60] sm:$0xf]
      %v1299 = vld [vmem:[%s7 + $0x64] sm:$0xf]
      %v1300 = vld [vmem:[%s7 + $0x68] sm:$0xf]
      %v1301 = vld [vmem:[%s7 + $0x6c] sm:$0xf]
      %v1302 = vld [vmem:[%s7 + $0x70] sm:$0xf]
      %v1303 = vld [vmem:[%s7 + $0x74] sm:$0xf]
      %v1304 = vld [vmem:[%s7 + $0x78] sm:$0xf]
      %v1305 = vld [vmem:[%s7 + $0x7c] sm:$0xf]
      %v1306 = vld [vmem:[%s7 + $0x80] sm:$0xf]
      %v1307 = vld [vmem:[%s7 + $0x84] sm:$0xf]
      %v1308 = vld [vmem:[%s7 + $0x88] sm:$0xf]
      %v1309 = vld [vmem:[%s7 + $0x8c] sm:$0xf]
      %v1310 = vld [vmem:[%s7 + $0x90] sm:$0xf]
      %v1311 = vld [vmem:[%s7 + $0x94] sm:$0xf]
      %v1312 = vld [vmem:[%s7 + $0x98] sm:$0xf]
      %v1313 = vld [vmem:[%s7 + $0x9c] sm:$0xf]
      %v1314 = vld [vmem:[%s7 + $0xa0] sm:$0xf]
      %v1315 = vld [vmem:[%s7 + $0xa4] sm:$0xf]
      %v1316 = vld [vmem:[%s7 + $0xa8] sm:$0xf]
      %v1317 = vld [vmem:[%s7 + $0xac] sm:$0xf]
      %v1318 = vld [vmem:[%s7 + $0xb0] sm:$0xf]
      %v1319 = vld [vmem:[%s7 + $0xb4] sm:$0xf]
      %v1320 = vld [vmem:[%s7 + $0xb8] sm:$0xf]
      %v1321 = vld [vmem:[%s7 + $0xbc] sm:$0xf]
      %v1370 = vunpack.c.l.b16 %v1274
      %v1371 = vunpack.c.l.b16 %v1275
      %v1372 = vunpack.c.l.b16 %v1276
      %v1373 = vunpack.c.l.b16 %v1277
      %v1374 = vunpack.c.l.b16 %v1278
      %v1375 = vunpack.c.l.b16 %v1279
      %v1376 = vunpack.c.l.b16 %v1280
      %v1377 = vunpack.c.l.b16 %v1281
      %v1378 = vunpack.c.l.b16 %v1282
      %v1379 = vunpack.c.l.b16 %v1283
      %v1380 = vunpack.c.l.b16 %v1284
      %v1381 = vunpack.c.l.b16 %v1285
      %v1382 = vunpack.c.l.b16 %v1286
      %v1383 = vunpack.c.l.b16 %v1287
      %v1384 = vunpack.c.l.b16 %v1288
      %v1385 = vunpack.c.l.b16 %v1289
      %v1386 = vunpack.c.l.b16 %v1290
      %v1387 = vunpack.c.l.b16 %v1291
      %v1388 = vunpack.c.l.b16 %v1292
      %v1389 = vunpack.c.l.b16 %v1293
      %v1390 = vunpack.c.l.b16 %v1294
      %v1391 = vunpack.c.l.b16 %v1295
      %v1392 = vunpack.c.l.b16 %v1296
      %v1393 = vunpack.c.l.b16 %v1297
      %v1394 = vunpack.c.l.b16 %v1298
      %v1395 = vunpack.c.l.b16 %v1299
      %v1396 = vunpack.c.l.b16 %v1300
      %v1397 = vunpack.c.l.b16 %v1301
      %v1398 = vunpack.c.l.b16 %v1302
      %v1399 = vunpack.c.l.b16 %v1303
      %v1400 = vunpack.c.l.b16 %v1304
      %v1401 = vunpack.c.l.b16 %v1305
      %v1402 = vunpack.c.l.b16 %v1306
      %v1403 = vunpack.c.l.b16 %v1307
      %v1404 = vunpack.c.l.b16 %v1308
      %v1405 = vunpack.c.l.b16 %v1309
      %v1406 = vunpack.c.l.b16 %v1310
      %v1407 = vunpack.c.l.b16 %v1311
      %v1408 = vunpack.c.l.b16 %v1312
      %v1409 = vunpack.c.l.b16 %v1313
      %v1410 = vunpack.c.l.b16 %v1314
      %v1411 = vunpack.c.l.b16 %v1315
      %v1412 = vunpack.c.l.b16 %v1316
      %v1413 = vunpack.c.l.b16 %v1317
      %v1414 = vunpack.c.l.b16 %v1318
      %v1415 = vunpack.c.l.b16 %v1319
      %v1416 = vunpack.c.l.b16 %v1320
      %v1417 = vunpack.c.l.b16 %v1321
      %v1418 = vpack.c.b16 %v1371, %v1370
      %v1419 = vpack.c.b16 %v1373, %v1372
      %v1420 = vpack.c.b16 %v1375, %v1374
      %v1421 = vpack.c.b16 %v1377, %v1376
      %v1422 = vpack.c.b16 %v1379, %v1378
      %v1423 = vpack.c.b16 %v1381, %v1380
      %v1424 = vpack.c.b16 %v1383, %v1382
      %v1425 = vpack.c.b16 %v1385, %v1384
      %v1426 = vpack.c.b16 %v1387, %v1386
      %v1427 = vpack.c.b16 %v1389, %v1388
      %v1428 = vpack.c.b16 %v1391, %v1390
      %v1429 = vpack.c.b16 %v1393, %v1392
      %v1430 = vpack.c.b16 %v1395, %v1394
      %v1431 = vpack.c.b16 %v1397, %v1396
      %v1432 = vpack.c.b16 %v1399, %v1398
      %v1433 = vpack.c.b16 %v1401, %v1400
      %v1434 = vpack.c.b16 %v1403, %v1402
      %v1435 = vpack.c.b16 %v1405, %v1404
      %v1436 = vpack.c.b16 %v1407, %v1406
      %v1437 = vpack.c.b16 %v1409, %v1408
      %v1438 = vpack.c.b16 %v1411, %v1410
      %v1439 = vpack.c.b16 %v1413, %v1412
      %v1440 = vpack.c.b16 %v1415, %v1414
      %v1441 = vpack.c.b16 %v1417, %v1416
      %1466 = vmatprep.subr.bf16.mxu0 0
      %1467 = vmatpush1.bf16.msra.mxu0 %v1425
      %1468 = vmatprep.subr.bf16.mxu0 0
      %1469 = vmatpush1.bf16.msra.mxu0 %v1424
      %1470 = vmatprep.subr.bf16.mxu0 0
      %1471 = vmatpush1.bf16.msra.mxu0 %v1423
      %1472 = vmatprep.subr.bf16.mxu0 0
      %1473 = vmatpush1.bf16.msra.mxu0 %v1422
      %1474 = vmatprep.subr.bf16.mxu0 0
      %1475 = vmatpush1.bf16.msra.mxu0 %v1421
      %1476 = vmatprep.subr.bf16.mxu0 0
      %1477 = vmatpush1.bf16.msra.mxu0 %v1420
      %1478 = vmatprep.subr.bf16.mxu0 0
      %1479 = vmatpush1.bf16.msra.mxu0 %v1419
      %1480 = vmatprep.subr.bf16.mxu0 0
      %1481 = vmatpush1.bf16.msra.mxu0 %v1418
      %1482 = vmatprep.subr.bf16.mxu0 0
      %1483 = vmatpush2.bf16.msra.mxu0 %v1433
      %1484 = vmatprep.subr.bf16.mxu0 0
      %1485 = vmatpush2.bf16.msra.mxu0 %v1432
      %1486 = vmatprep.subr.bf16.mxu0 0
      %1487 = vmatpush2.bf16.msra.mxu0 %v1431
      %1488 = vmatprep.subr.bf16.mxu0 0
      %1489 = vmatpush2.bf16.msra.mxu0 %v1430
      %1490 = vmatprep.subr.bf16.mxu0 0
      %1491 = vmatpush2.bf16.msra.mxu0 %v1429
      %1492 = vmatprep.subr.bf16.mxu0 0
      %1493 = vmatpush2.bf16.msra.mxu0 %v1428
      %1494 = vmatprep.subr.bf16.mxu0 0
      %1495 = vmatpush2.bf16.msra.mxu0 %v1427
      %1496 = vmatprep.subr.bf16.mxu0 0
      %1497 = vmatpush2.bf16.msra.mxu0 %v1426
      %1498 = vmatprep.mubr.bf16.mxu0 %v1272
      %1499 = vmatmul.mubr.bf16.gmra.mxu0 %v1271
      %v1500 = vpop.f32.mrf.mxu0
      %v1501 = vadd.f32 0.0, %v1500
      %v1502 = vpop.f32.mrf.mxu0
      %v1503 = vpop.f32.mrf.mxu0
      %v1504 = vpop.f32.mrf.mxu0
      %1505 = vdwg.mxu0
      %1506 = vmatprep.subr.bf16.mxu0 0
      %1507 = vmatpush1.bf16.msra.mxu0 %v1441
      %1508 = vmatprep.subr.bf16.mxu0 0
      %1509 = vmatpush1.bf16.msra.mxu0 %v1440
      %1510 = vmatprep.subr.bf16.mxu0 0
      %1511 = vmatpush1.bf16.msra.mxu0 %v1439
      %1512 = vmatprep.subr.bf16.mxu0 0
      %1513 = vmatpush1.bf16.msra.mxu0 %v1438
      %1514 = vmatprep.subr.bf16.mxu0 0
      %1515 = vmatpush1.bf16.msra.mxu0 %v1437
      %1516 = vmatprep.subr.bf16.mxu0 0
      %1517 = vmatpush1.bf16.msra.mxu0 %v1436
      %1518 = vmatprep.subr.bf16.mxu0 0
      %1519 = vmatpush1.bf16.msra.mxu0 %v1435
      %1520 = vmatprep.subr.bf16.mxu0 0
      %1521 = vmatpush1.bf16.msra.mxu0 %v1434
      %1522 = vmatprep.subr.bf16.mxu0 0
      %1523 = vmatpush2.bf16.msra.mxu0 0
      %1524 = vmatprep.subr.bf16.mxu0 0
      %1525 = vmatpush2.bf16.msra.mxu0 0
      %1526 = vmatprep.subr.bf16.mxu0 0
      %1527 = vmatpush2.bf16.msra.mxu0 0
      %1528 = vmatprep.subr.bf16.mxu0 0
      %1529 = vmatpush2.bf16.msra.mxu0 0
      %1530 = vmatprep.subr.bf16.mxu0 0
      %1531 = vmatpush2.bf16.msra.mxu0 0
      %1532 = vmatprep.subr.bf16.mxu0 0
      %1533 = vmatpush2.bf16.msra.mxu0 0
      %1534 = vmatprep.subr.bf16.mxu0 0
      %1535 = vmatpush2.bf16.msra.mxu0 0
      %1536 = vmatprep.subr.bf16.mxu0 0
      %1537 = vmatpush2.bf16.msra.mxu0 0
      %1538 = vmatprep.mubr.bf16.mxu0 0
      %1539 = vmatmul.mubr.bf16.gmra.mxu0 %v1273
      %v1540 = vpop.f32.mrf.mxu0
      %v1541 = vadd.f32 %v1501, %v1540
      %v1542 = vpop.f32.mrf.mxu0
      %v1543 = vpop.f32.mrf.mxu0
      %v1544 = vpop.f32.mrf.mxu0
      %1545 = vdwg.mxu0
      %v1550 = vunpack.c.l.b16 %v1267
      %v1551 = vunpack.c.l.b16 %v1268
      %v1552 = vunpack.c.l.b16 %v1269
      %v1553 = vunpack.c.l.b16 %v1270
      %v1554 = vpack.c.b16 %v1551, %v1550
      %v1555 = vpack.c.b16 %v1553, %v1552
      %v1559 = vsel %vm786, %v1266, 0
      %1561 = vmatprep.subr.bf16.mxu0 0
      %1562 = vmatpush1.bf16.msra.mxu0 0
      %1563 = vmatprep.subr.bf16.mxu0 0
      %1564 = vmatpush1.bf16.msra.mxu0 0
      %1565 = vmatprep.subr.bf16.mxu0 0
      %1566 = vmatpush1.bf16.msra.mxu0 0
      %1567 = vmatprep.subr.bf16.mxu0 0
      %1568 = vmatpush1.bf16.msra.mxu0 0
      %1569 = vmatprep.subr.bf16.mxu0 0
      %1570 = vmatpush1.bf16.msra.mxu0 0
      %1571 = vmatprep.subr.bf16.mxu0 0
      %1572 = vmatpush1.bf16.msra.mxu0 0
      %1573 = vmatprep.subr.bf16.mxu0 0
      %1574 = vmatpush1.bf16.msra.mxu0 %v1555
      %1575 = vmatprep.subr.bf16.mxu0 0
      %1576 = vmatpush1.bf16.msra.mxu0 %v1554
      %1577 = vmatprep.subr.bf16.mxu0 0
      %1578 = vmatpush2.bf16.msra.mxu0 0
      %1579 = vmatprep.subr.bf16.mxu0 0
      %1580 = vmatpush2.bf16.msra.mxu0 0
      %1581 = vmatprep.subr.bf16.mxu0 0
      %1582 = vmatpush2.bf16.msra.mxu0 0
      %1583 = vmatprep.subr.bf16.mxu0 0
      %1584 = vmatpush2.bf16.msra.mxu0 0
      %1585 = vmatprep.subr.bf16.mxu0 0
      %1586 = vmatpush2.bf16.msra.mxu0 0
      %1587 = vmatprep.subr.bf16.mxu0 0
      %1588 = vmatpush2.bf16.msra.mxu0 0
      %1589 = vmatprep.subr.bf16.mxu0 0
      %1590 = vmatpush2.bf16.msra.mxu0 0
      %1591 = vmatprep.subr.bf16.mxu0 0
      %1592 = vmatpush2.bf16.msra.mxu0 0
      %1593 = vmatprep.mubr.bf16.mxu0 0
      %1594 = vmatmul.mubr.bf16.gmra.mxu0 %v1559
      %v1595 = vpop.f32.mrf.mxu0
      %v1596 = vadd.f32 %v1541, %v1595
      %v1597 = vpop.f32.mrf.mxu0
      %v1598 = vpop.f32.mrf.mxu0
      %v1599 = vpop.f32.mrf.mxu0
      %1600 = vdwg.mxu0
      %v1601 = vld [vmem:[%s8] sm:$0x1]
      %v1603 = vlaneseq
      %v1604 = vshrl.u32 %v1603, 7
      %v1605 = vsub.s32 0, %v1604
      %v1606 = vrot.slane %v1601, %v1605
      %v1608 = vadd.f32 %v1596, %v1606
      %v1609 = vadd.f32 %v1608, %v469
      %1610 = vst.msk [vmem:[%s467] sm:$0xff] %vm786, %v1609
      %p1611 = scmp.lt.s32.totalorder %s24, 1
      %s1612 = scalar_select %p1611, %s24, 1
      %p1613 = scmp.lt.s32.totalorder %s25, 0
      %s1614 = scalar_select %p1613, %s25, 0
      %s1615 = sadd.s32 %s1614, %s1612
      %s1616 = smul.addr %s1615, 8
      %s1617 = scalar_lea.vmem %s9, %s1616
      // Predicated region
      $region57: #{fwd.12} parent=55 // pred_check
        %p1618 = pneg %p274
      $region58: #{fwd.12} parent=55 // pred_check_branch
        %1620 = sbr.rel (%p1618) target = $region60
      $region59: #{fwd.12} parent=55 // pred_region
        _
      $region60: #{fwd.12} parent=55 // pred_fallthru
        _
    $region56: #{fwd.12} parent=5 // pred_fallthru
      _
    %p1621 = scmp.le.s32.totalorder 2, %s15
    // Predicated region
    $region61: #{fwd.12} parent=5 // pred_check
      %p1622 = pneg %p1621
    $region62: #{fwd.12} parent=5 // pred_check_branch
      %1624 = sbr.rel (%p1622) target = $region64
    $region63: #{fwd.12} parent=5 // pred_region
      %s1625 = ssub.s32 %s15, 2
      // Predicated region
      $region65: #{fwd.12} parent=63 // pred_check
        %p1626 = pneg %p280
      $region66: #{fwd.12} parent=63 // pred_check_branch
        %1628 = sbr.rel (%p1626) target = $region68
      $region67: #{fwd.12} parent=63 // pred_region
        %p1629 = scmp.lt.s32.totalorder %s26, 1
        %s1630 = scalar_select %p1629, %s26, 1
        %p1631 = scmp.lt.s32.totalorder %s27, 0
        %s1632 = scalar_select %p1631, %s27, 0
        %s1633 = sadd.s32 %s1632, %s1630
        %s1634 = smul.addr %s1633, 8
        %s1635 = scalar_lea.vmem %s9, %s1634
      $region68: #{fwd.12} parent=63 // pred_fallthru
        _
    $region64: #{fwd.12} parent=5 // pred_fallthru
      _
  $region6: #{fwd.12} parent=0 // loop_footer
    %s19 = sadd.s32 1, %s15
  $region7: #{fwd.12} parent=0 // loop_footer_branch
    %14 = sbr.rel target = $region3
  $region8: #{fwd.12} parent=0 // loop_exit
    _

</llo_original>
